<compile_context>
chip_gen: v6e
topology: v6e:2x2x1
jax: 0.10.0
libtpu: 0.0.40
codegen_flags: <defaults>
</compile_context>

<pallas_src>
import jax
import jax.numpy as jnp
import numpy as np
from jax.experimental import pallas as pl
from jax.experimental.pallas import tpu as pltpu

EPS = 1e-5
NEG_SLOPE = 0.2

# (parity, shift) combinations needed to express a 3x3 conv on the 2x-upsampled image
# directly on its sub-pixel parity planes:  plane index p, plane-row shift r.
_SHIFTS = ((0, 0), (0, 1), (1, -1), (1, 0))


def _fold4(v, c):
    """Sum the four lane groups of width c of a (1, 4*c) row vector -> (1, c)."""
    return v[:, 0:c] + v[:, c:2 * c] + v[:, 2 * c:3 * c] + v[:, 3 * c:4 * c]


def _decoder_kernel(x_ref, w1p_ref, b1p_ref, w2p_ref, b2p_ref, o_ref):
    # x_ref block: (1, H, W, Cin) -- one batch element per grid step.
    H, W, Cin = x_ref.shape[1], x_ref.shape[2], x_ref.shape[3]
    C1 = w1p_ref.shape[1] // 4
    Cout = b2p_ref.shape[1] // 4
    HW = H * W
    inv_n = 1.0 / (4.0 * HW)          # InstanceNorm averages over (2H)*(2W) pixels

    x = x_ref[0].astype(jnp.float32)  # (H, W, Cin)

    # ---- stage 1: ConvTranspose2d(Cin->C1, k3, s2, p1, op1) as ONE matmul ----------
    # taps x[m+dy, n+dx], (dy, dx) in {0,1}^2, zero outside the image.
    zr = jnp.zeros((1, W, Cin), jnp.float32)
    zc = jnp.zeros((H, 1, Cin), jnp.float32)
    x01 = jnp.concatenate([x[:, 1:, :], zc], axis=1)      # x[m,   n+1]
    x10 = jnp.concatenate([x[1:, :, :], zr], axis=0)      # x[m+1, n  ]
    x11 = jnp.concatenate([x10[:, 1:, :], zc], axis=1)    # x[m+1, n+1]
    p1 = jnp.concatenate(
        [t.reshape(HW, Cin) for t in (x, x01, x10, x11)], axis=1)   # (HW, 4*Cin)
    r = jnp.dot(p1, w1p_ref[...], preferred_element_type=jnp.float32)  # (HW, 4*C1)
    r = r + b1p_ref[...]              # columns are (parity_y, parity_x, channel)

    # ---- stage 2+3: InstanceNorm (no affine) + LeakyReLU(0.2), packed --------------
    mean1 = _fold4(jnp.sum(r, axis=0, keepdims=True), C1) * inv_n       # (1, C1)
    d = r - jnp.concatenate([mean1] * 4, axis=1)
    var1 = _fold4(jnp.sum(d * d, axis=0, keepdims=True), C1) * inv_n
    g = d * jax.lax.rsqrt(jnp.concatenate([var1] * 4, axis=1) + EPS)
    g = jnp.where(g >= 0, g, NEG_SLOPE * g)                             # (HW, 4*C1)

    # ---- stage 4: ConvTranspose2d(C1->Cout, k3, s1, p1) as ONE matmul in parity space
    zr1 = jnp.zeros((1, W, C1), jnp.float32)
    zc1 = jnp.zeros((H, 1, C1), jnp.float32)

    def shift_r(t, ry):               # out[m] = t[m + ry], zero outside
        if ry == 0:
            return t
        if ry == 1:
            return jnp.concatenate([t[1:, :, :], zr1], axis=0)
        return jnp.concatenate([zr1, t[:-1, :, :]], axis=0)

    def shift_c(t, sx):               # out[:, n] = t[:, n + sx], zero outside
        if sx == 0:
            return t
        if sx == 1:
            return jnp.concatenate([t[:, 1:, :], zc1], axis=1)
        return jnp.concatenate([zc1, t[:, :-1, :]], axis=1)

    planes = [g[:, p * C1:(p + 1) * C1].reshape(H, W, C1) for p in range(4)]
    blocks = []
    for (py, ry) in _SHIFTS:
        for (px, sx) in _SHIFTS:
            t = shift_c(shift_r(planes[py * 2 + px], ry), sx)
            blocks.append(t.reshape(HW, C1))
    p2 = jnp.concatenate(blocks, axis=1)                                 # (HW, 16*C1)
    z = jnp.dot(p2, w2p_ref[...], preferred_element_type=jnp.float32)    # (HW, 4*Cout)
    z = z + b2p_ref[...]

    # ---- stage 5+6: InstanceNorm + Sigmoid, packed ----------------------------------
    mean2 = _fold4(jnp.sum(z, axis=0, keepdims=True), Cout) * inv_n
    d2 = z - jnp.concatenate([mean2] * 4, axis=1)
    var2 = _fold4(jnp.sum(d2 * d2, axis=0, keepdims=True), Cout) * inv_n
    y = d2 * jax.lax.rsqrt(jnp.concatenate([var2] * 4, axis=1) + EPS)
    y = 1.0 / (1.0 + jnp.exp(-y))

    o_ref[0] = y.reshape(H, W, 4 * Cout).astype(o_ref.dtype)


# ------------------------------ weight packing (wrapper, XLA) -----------------------
def _pack_convt_s2_weight(w1):
    """ConvTranspose2d(k3,s2,p1,op1) weight (Cin, C1, 3, 3) -> (4*Cin, 4*C1).

    Rows are (dy, dx, ci) input taps, columns are (parity_y, parity_x, co).
    out[2m+py, 2n+px, co] = sum_{dy,dx,ci} x[m+dy, n+dx, ci] * W1p[(dy,dx,ci),(py,px,co)]
    """
    Cin, C1 = w1.shape[0], w1.shape[1]
    wt = jnp.transpose(w1, (2, 3, 0, 1))                 # wt[ky, kx, ci, co]
    A = jnp.zeros((2, 2, 2, 2, Cin, C1), w1.dtype)       # [py, px, dy, dx, ci, co]
    A = A.at[0, 0, 0, 0].set(wt[1, 1])
    A = A.at[0, 1, 0, 0].set(wt[1, 2])
    A = A.at[0, 1, 0, 1].set(wt[1, 0])
    A = A.at[1, 0, 0, 0].set(wt[2, 1])
    A = A.at[1, 0, 1, 0].set(wt[0, 1])
    A = A.at[1, 1, 0, 0].set(wt[2, 2])
    A = A.at[1, 1, 0, 1].set(wt[2, 0])
    A = A.at[1, 1, 1, 0].set(wt[0, 2])
    A = A.at[1, 1, 1, 1].set(wt[0, 0])
    return jnp.transpose(A, (2, 3, 4, 0, 1, 5)).reshape(4 * Cin, 4 * C1)


def _pack_convt_s1_weight(w2):
    """ConvTranspose2d(k3,s1,p1) weight (C1, Cout, 3, 3) -> (16*C1, 4*Cout) for the
    parity-space formulation (rows = (plane-shift combo, ci), cols = (qy, qx, co))."""
    C1, Cout = w2.shape[0], w2.shape[1]
    # equivalent "same" correlation kernel: K[dy, dx, ci, co] = w2[ci, co, 2-dy, 2-dx]
    K = jnp.transpose(w2, (2, 3, 0, 1))[::-1, ::-1]
    Wp = jnp.zeros((4, 4, C1, 2, 2, Cout), w2.dtype)     # [a, b, ci, qy, qx, co]
    for ai, (py, ry) in enumerate(_SHIFTS):
        for bi, (px, sx) in enumerate(_SHIFTS):
            for qy in range(2):
                dy = 2 * ry + py - qy                    # tap offset delta_y + 1 below
                if dy < -1 or dy > 1:
                    continue
                for qx in range(2):
                    dx = 2 * sx + px - qx
                    if dx < -1 or dx > 1:
                        continue
                    Wp = Wp.at[ai, bi, :, qy, qx, :].set(K[dy + 1, dx + 1])
    return Wp.reshape(16 * C1, 4 * Cout)


@jax.jit
def decoder_forward(x, w1, b1, w2, b2):
    """Decoder forward.

    x : (N, Cin=64, H, W)  NCHW (PyTorch convention)
    w1: (64, 32, 3, 3)  ConvTranspose2d weight (in, out, kh, kw);  b1: (32,)
    w2: (32,  3, 3, 3)  ConvTranspose2d weight;                    b2: (3,)
    returns: (N, 3, 2H, 2W) NCHW
    """
    N, Cin, H, W = x.shape
    C1 = w1.shape[1]
    Cout = w2.shape[1]

    x_nhwc = jnp.transpose(x, (0, 2, 3, 1)).astype(jnp.float32)
    w1p = _pack_convt_s2_weight(w1.astype(jnp.float32))
    b1p = jnp.tile(b1.astype(jnp.float32), (4,)).reshape(1, 4 * C1)
    w2p = _pack_convt_s1_weight(w2.astype(jnp.float32))
    b2p = jnp.tile(b2.astype(jnp.float32), (4,)).reshape(1, 4 * Cout)

    packed = pl.pallas_call(
        _decoder_kernel,
        out_shape=jax.ShapeDtypeStruct((N, H, W, 4 * Cout), jnp.float32),
        grid_spec=pl.GridSpec(
            grid=(N,),
            in_specs=[
                pl.BlockSpec((1, H, W, Cin), lambda n: (n, 0, 0, 0)),
                pl.BlockSpec((4 * Cin, 4 * C1), lambda n: (0, 0)),
                pl.BlockSpec((1, 4 * C1), lambda n: (0, 0)),
                pl.BlockSpec((16 * C1, 4 * Cout), lambda n: (0, 0)),
                pl.BlockSpec((1, 4 * Cout), lambda n: (0, 0)),
            ],
            out_specs=pl.BlockSpec((1, H, W, 4 * Cout), lambda n: (n, 0, 0, 0)),
        ),
        compiler_params=pltpu.CompilerParams(
            dimension_semantics=("parallel",)),
    )(x_nhwc, w1p, b1p, w2p, b2p)

    # De-interleave the sub-pixel parities: (N,H,W,2,2,Cout) -> (N,2H,2W,Cout) -> NCHW.
    out = packed.reshape(N, H, W, 2, 2, Cout)
    out = jnp.transpose(out, (0, 1, 3, 2, 4, 5)).reshape(N, 2 * H, 2 * W, Cout)
    return jnp.transpose(out, (0, 3, 1, 2))


# ------------------------------ pure-JAX reference -----------------------------------
def _ref_decoder(x, w1, b1, w2, b2):
    def conv_t(z, w, b, stride, padding, output_padding):
        k = w.shape[2]
        lo = k - 1 - padding
        hi = k - 1 - padding + output_padding
        kern = jnp.transpose(w, (1, 0, 2, 3))[:, :, ::-1, ::-1]   # (Cout, Cin, kh, kw)
        y = jax.lax.conv_general_dilated(
            z, kern, window_strides=(1, 1),
            padding=((lo, hi), (lo, hi)),
            lhs_dilation=(stride, stride),
            dimension_numbers=("NCHW", "OIHW", "NCHW"),
            precision=jax.lax.Precision.HIGHEST)
        return y + b.reshape(1, -1, 1, 1)

    def inorm(y):
        m = jnp.mean(y, axis=(2, 3), keepdims=True)
        v = jnp.mean((y - m) ** 2, axis=(2, 3), keepdims=True)
        return (y - m) * jax.lax.rsqrt(v + EPS)

    h = conv_t(x, w1, b1, 2, 1, 1)
    h = inorm(h)
    h = jnp.where(h >= 0, h, NEG_SLOPE * h)
    y = conv_t(h, w2, b2, 1, 1, 0)
    y = inorm(y)
    return jax.nn.sigmoid(y)


if __name__ == "__main__":
    # Channel counts fixed by the module (upsampling_nf=[64], same_size_nf=[32],
    # output_nc=3); keep batch/spatial small.
    N, Cin, H, W = 2, 64, 8, 8
    C1, Cout = 32, 3

    key = jax.random.PRNGKey(0)
    kx, kw1, kb1, kw2, kb2 = jax.random.split(key, 5)

    x = jax.random.normal(kx, (N, Cin, H, W), jnp.float32)
    # Exact init does not affect forward semantics; use small random weights/biases.
    w1 = jax.random.normal(kw1, (Cin, C1, 3, 3), jnp.float32) * 0.05
    b1 = jax.random.normal(kb1, (C1,), jnp.float32) * 0.05
    w2 = jax.random.normal(kw2, (C1, Cout, 3, 3), jnp.float32) * 0.05
    b2 = jax.random.normal(kb2, (Cout,), jnp.float32) * 0.05

    out = jax.block_until_ready(decoder_forward(x, w1, b1, w2, b2))
    assert out.shape == (N, Cout, 2 * H, 2 * W), out.shape

    ref = jax.block_until_ready(_ref_decoder(x, w1, b1, w2, b2))
    np.testing.assert_allclose(np.asarray(out), np.asarray(ref),
                               rtol=2e-3, atol=2e-3)

    print("KERNEL_OK")
</pallas_src>

<mosaic_0001>
module attributes {stable_mosaic.version = 11 : i64} {
  func.func @_decoder_kernel(%arg0: i32, %arg1: memref<1x8x8x64xf32, #tpu.memory_space<vmem>>, %arg2: memref<256x128xf32, #tpu.memory_space<vmem>>, %arg3: memref<1x128xf32, #tpu.memory_space<vmem>>, %arg4: memref<512x12xf32, #tpu.memory_space<vmem>>, %arg5: memref<1x12xf32, #tpu.memory_space<vmem>>, %arg6: memref<1x8x8x12xf32, #tpu.memory_space<vmem>>) attributes {dimension_semantics = [#tpu.dimension_semantics<parallel>], iteration_bounds = array<i64: 2>, scalar_prefetch = 0 : i64, scratch_operands = 0 : i64, tpu.core_type = #tpu.core_type<tc>, window_params = [{transform_indices = @transform_0, window_bounds = array<i64: 1, 8, 8, 64>}, {pipeline_mode = #tpu.pipeline_mode<synchronous>, transform_indices = @transform_1, window_bounds = array<i64: 256, 128>}, {pipeline_mode = #tpu.pipeline_mode<synchronous>, transform_indices = @transform_2, window_bounds = array<i64: 1, 128>}, {pipeline_mode = #tpu.pipeline_mode<synchronous>, transform_indices = @transform_3, window_bounds = array<i64: 512, 12>}, {pipeline_mode = #tpu.pipeline_mode<synchronous>, transform_indices = @transform_4, window_bounds = array<i64: 1, 12>}, {transform_indices = @transform_5, window_bounds = array<i64: 1, 8, 8, 12>}]} {
    %c0 = arith.constant 0 : index
    %c0_0 = arith.constant 0 : index
    %c0_1 = arith.constant 0 : index
    %c0_2 = arith.constant 0 : index
    %0 = vector.load %arg1[%c0, %c0_0, %c0_1, %c0_2] : memref<1x8x8x64xf32, #tpu.memory_space<vmem>>, vector<1x8x8x64xf32>
    %1 = vector.shape_cast %0 : vector<1x8x8x64xf32> to vector<8x8x64xf32>
    %cst = arith.constant 0.000000e+00 : f32
    %2 = vector.broadcast %cst : f32 to vector<1x8x64xf32>
    %cst_3 = arith.constant 0.000000e+00 : f32
    %3 = vector.broadcast %cst_3 : f32 to vector<8x1x64xf32>
    %4 = vector.extract_strided_slice %1 {offsets = [0, 1, 0], sizes = [8, 7, 64], strides = [1, 1, 1]} : vector<8x8x64xf32> to vector<8x7x64xf32>
    %5 = tpu.concatenate %4, %3 in 1 : vector<8x7x64xf32>, vector<8x1x64xf32> -> vector<8x8x64xf32>
    %6 = vector.extract_strided_slice %1 {offsets = [1, 0, 0], sizes = [7, 8, 64], strides = [1, 1, 1]} : vector<8x8x64xf32> to vector<7x8x64xf32>
    %7 = tpu.concatenate %6, %2 in 0 : vector<7x8x64xf32>, vector<1x8x64xf32> -> vector<8x8x64xf32>
    %8 = vector.extract_strided_slice %7 {offsets = [0, 1, 0], sizes = [8, 7, 64], strides = [1, 1, 1]} : vector<8x8x64xf32> to vector<8x7x64xf32>
    %9 = tpu.concatenate %8, %3 in 1 : vector<8x7x64xf32>, vector<8x1x64xf32> -> vector<8x8x64xf32>
    %10 = vector.shape_cast %1 : vector<8x8x64xf32> to vector<64x64xf32>
    %11 = vector.shape_cast %5 : vector<8x8x64xf32> to vector<64x64xf32>
    %12 = vector.shape_cast %7 : vector<8x8x64xf32> to vector<64x64xf32>
    %13 = vector.shape_cast %9 : vector<8x8x64xf32> to vector<64x64xf32>
    %14 = tpu.concatenate %10, %11, %12, %13 in 1 : vector<64x64xf32>, vector<64x64xf32>, vector<64x64xf32>, vector<64x64xf32> -> vector<64x256xf32>
    %c0_4 = arith.constant 0 : index
    %c0_5 = arith.constant 0 : index
    %15 = vector.load %arg2[%c0_4, %c0_5] : memref<256x128xf32, #tpu.memory_space<vmem>>, vector<256x128xf32>
    %cst_6 = arith.constant dense<0.000000e+00> : vector<64x128xf32>
    %16 = tpu.matmul %14, %15, %cst_6 {dimension_numbers = #tpu.dot_dimension_numbers<[1], [0], [0], [1], [0, 0, 1, 1], [], []>} : vector<64x256xf32>, vector<256x128xf32>, vector<64x128xf32> -> vector<64x128xf32>
    %c0_7 = arith.constant 0 : index
    %c0_8 = arith.constant 0 : index
    %17 = vector.load %arg3[%c0_7, %c0_8] : memref<1x128xf32, #tpu.memory_space<vmem>>, vector<1x128xf32>
    %18 = vector.broadcast %17 : vector<1x128xf32> to vector<64x128xf32>
    %19 = arith.addf %16, %18 : vector<64x128xf32>
    %cst_9 = arith.constant dense<0.000000e+00> : vector<128xf32>
    %20 = vector.multi_reduction <add>, %19, %cst_9 [0] : vector<64x128xf32> to vector<128xf32>
    %21 = vector.shape_cast %20 : vector<128xf32> to vector<1x128xf32>
    %22 = vector.extract_strided_slice %21 {offsets = [0, 0], sizes = [1, 32], strides = [1, 1]} : vector<1x128xf32> to vector<1x32xf32>
    %23 = vector.extract_strided_slice %21 {offsets = [0, 32], sizes = [1, 32], strides = [1, 1]} : vector<1x128xf32> to vector<1x32xf32>
    %24 = arith.addf %22, %23 : vector<1x32xf32>
    %25 = vector.extract_strided_slice %21 {offsets = [0, 64], sizes = [1, 32], strides = [1, 1]} : vector<1x128xf32> to vector<1x32xf32>
    %26 = arith.addf %24, %25 : vector<1x32xf32>
    %27 = vector.extract_strided_slice %21 {offsets = [0, 96], sizes = [1, 32], strides = [1, 1]} : vector<1x128xf32> to vector<1x32xf32>
    %28 = arith.addf %26, %27 : vector<1x32xf32>
    %cst_10 = arith.constant 3.906250e-03 : f32
    %29 = vector.broadcast %cst_10 : f32 to vector<1x32xf32>
    %30 = arith.mulf %28, %29 : vector<1x32xf32>
    %31 = tpu.concatenate %30, %30, %30, %30 in 1 : vector<1x32xf32>, vector<1x32xf32>, vector<1x32xf32>, vector<1x32xf32> -> vector<1x128xf32>
    %32 = vector.broadcast %31 : vector<1x128xf32> to vector<64x128xf32>
    %33 = arith.subf %19, %32 : vector<64x128xf32>
    %34 = arith.mulf %33, %33 : vector<64x128xf32>
    %cst_11 = arith.constant dense<0.000000e+00> : vector<128xf32>
    %35 = vector.multi_reduction <add>, %34, %cst_11 [0] : vector<64x128xf32> to vector<128xf32>
    %36 = vector.shape_cast %35 : vector<128xf32> to vector<1x128xf32>
    %37 = vector.extract_strided_slice %36 {offsets = [0, 0], sizes = [1, 32], strides = [1, 1]} : vector<1x128xf32> to vector<1x32xf32>
    %38 = vector.extract_strided_slice %36 {offsets = [0, 32], sizes = [1, 32], strides = [1, 1]} : vector<1x128xf32> to vector<1x32xf32>
    %39 = arith.addf %37, %38 : vector<1x32xf32>
    %40 = vector.extract_strided_slice %36 {offsets = [0, 64], sizes = [1, 32], strides = [1, 1]} : vector<1x128xf32> to vector<1x32xf32>
    %41 = arith.addf %39, %40 : vector<1x32xf32>
    %42 = vector.extract_strided_slice %36 {offsets = [0, 96], sizes = [1, 32], strides = [1, 1]} : vector<1x128xf32> to vector<1x32xf32>
    %43 = arith.addf %41, %42 : vector<1x32xf32>
    %cst_12 = arith.constant 3.906250e-03 : f32
    %44 = vector.broadcast %cst_12 : f32 to vector<1x32xf32>
    %45 = arith.mulf %43, %44 : vector<1x32xf32>
    %46 = tpu.concatenate %45, %45, %45, %45 in 1 : vector<1x32xf32>, vector<1x32xf32>, vector<1x32xf32>, vector<1x32xf32> -> vector<1x128xf32>
    %cst_13 = arith.constant 9.99999974E-6 : f32
    %47 = vector.broadcast %cst_13 : f32 to vector<1x128xf32>
    %48 = arith.addf %46, %47 : vector<1x128xf32>
    %49 = math.rsqrt %48 : vector<1x128xf32>
    %50 = vector.broadcast %49 : vector<1x128xf32> to vector<64x128xf32>
    %51 = arith.mulf %33, %50 : vector<64x128xf32>
    %cst_14 = arith.constant 0.000000e+00 : f32
    %52 = vector.broadcast %cst_14 : f32 to vector<64x128xf32>
    %53 = arith.cmpf oge, %51, %52 : vector<64x128xf32>
    %cst_15 = arith.constant 2.000000e-01 : f32
    %54 = vector.broadcast %cst_15 : f32 to vector<64x128xf32>
    %55 = arith.mulf %54, %51 : vector<64x128xf32>
    %56 = arith.select %53, %51, %55 : vector<64x128xi1>, vector<64x128xf32>
    %cst_16 = arith.constant 0.000000e+00 : f32
    %57 = vector.broadcast %cst_16 : f32 to vector<1x8x32xf32>
    %cst_17 = arith.constant 0.000000e+00 : f32
    %58 = vector.broadcast %cst_17 : f32 to vector<8x1x32xf32>
    %59 = vector.extract_strided_slice %56 {offsets = [0, 0], sizes = [64, 32], strides = [1, 1]} : vector<64x128xf32> to vector<64x32xf32>
    %60 = vector.shape_cast %59 : vector<64x32xf32> to vector<8x8x32xf32>
    %61 = vector.extract_strided_slice %56 {offsets = [0, 32], sizes = [64, 32], strides = [1, 1]} : vector<64x128xf32> to vector<64x32xf32>
    %62 = vector.shape_cast %61 : vector<64x32xf32> to vector<8x8x32xf32>
    %63 = vector.extract_strided_slice %56 {offsets = [0, 64], sizes = [64, 32], strides = [1, 1]} : vector<64x128xf32> to vector<64x32xf32>
    %64 = vector.shape_cast %63 : vector<64x32xf32> to vector<8x8x32xf32>
    %65 = vector.extract_strided_slice %56 {offsets = [0, 96], sizes = [64, 32], strides = [1, 1]} : vector<64x128xf32> to vector<64x32xf32>
    %66 = vector.shape_cast %65 : vector<64x32xf32> to vector<8x8x32xf32>
    %67 = vector.shape_cast %60 : vector<8x8x32xf32> to vector<64x32xf32>
    %68 = vector.extract_strided_slice %60 {offsets = [0, 1, 0], sizes = [8, 7, 32], strides = [1, 1, 1]} : vector<8x8x32xf32> to vector<8x7x32xf32>
    %69 = tpu.concatenate %68, %58 in 1 : vector<8x7x32xf32>, vector<8x1x32xf32> -> vector<8x8x32xf32>
    %70 = vector.shape_cast %69 : vector<8x8x32xf32> to vector<64x32xf32>
    %71 = vector.extract_strided_slice %62 {offsets = [0, 0, 0], sizes = [8, 7, 32], strides = [1, 1, 1]} : vector<8x8x32xf32> to vector<8x7x32xf32>
    %72 = tpu.concatenate %58, %71 in 1 : vector<8x1x32xf32>, vector<8x7x32xf32> -> vector<8x8x32xf32>
    %73 = vector.shape_cast %72 : vector<8x8x32xf32> to vector<64x32xf32>
    %74 = vector.shape_cast %62 : vector<8x8x32xf32> to vector<64x32xf32>
    %75 = vector.extract_strided_slice %60 {offsets = [1, 0, 0], sizes = [7, 8, 32], strides = [1, 1, 1]} : vector<8x8x32xf32> to vector<7x8x32xf32>
    %76 = tpu.concatenate %75, %57 in 0 : vector<7x8x32xf32>, vector<1x8x32xf32> -> vector<8x8x32xf32>
    %77 = vector.shape_cast %76 : vector<8x8x32xf32> to vector<64x32xf32>
    %78 = vector.extract_strided_slice %60 {offsets = [1, 0, 0], sizes = [7, 8, 32], strides = [1, 1, 1]} : vector<8x8x32xf32> to vector<7x8x32xf32>
    %79 = tpu.concatenate %78, %57 in 0 : vector<7x8x32xf32>, vector<1x8x32xf32> -> vector<8x8x32xf32>
    %80 = vector.extract_strided_slice %79 {offsets = [0, 1, 0], sizes = [8, 7, 32], strides = [1, 1, 1]} : vector<8x8x32xf32> to vector<8x7x32xf32>
    %81 = tpu.concatenate %80, %58 in 1 : vector<8x7x32xf32>, vector<8x1x32xf32> -> vector<8x8x32xf32>
    %82 = vector.shape_cast %81 : vector<8x8x32xf32> to vector<64x32xf32>
    %83 = vector.extract_strided_slice %62 {offsets = [1, 0, 0], sizes = [7, 8, 32], strides = [1, 1, 1]} : vector<8x8x32xf32> to vector<7x8x32xf32>
    %84 = tpu.concatenate %83, %57 in 0 : vector<7x8x32xf32>, vector<1x8x32xf32> -> vector<8x8x32xf32>
    %85 = vector.extract_strided_slice %84 {offsets = [0, 0, 0], sizes = [8, 7, 32], strides = [1, 1, 1]} : vector<8x8x32xf32> to vector<8x7x32xf32>
    %86 = tpu.concatenate %58, %85 in 1 : vector<8x1x32xf32>, vector<8x7x32xf32> -> vector<8x8x32xf32>
    %87 = vector.shape_cast %86 : vector<8x8x32xf32> to vector<64x32xf32>
    %88 = vector.extract_strided_slice %62 {offsets = [1, 0, 0], sizes = [7, 8, 32], strides = [1, 1, 1]} : vector<8x8x32xf32> to vector<7x8x32xf32>
    %89 = tpu.concatenate %88, %57 in 0 : vector<7x8x32xf32>, vector<1x8x32xf32> -> vector<8x8x32xf32>
    %90 = vector.shape_cast %89 : vector<8x8x32xf32> to vector<64x32xf32>
    %91 = vector.extract_strided_slice %64 {offsets = [0, 0, 0], sizes = [7, 8, 32], strides = [1, 1, 1]} : vector<8x8x32xf32> to vector<7x8x32xf32>
    %92 = tpu.concatenate %57, %91 in 0 : vector<1x8x32xf32>, vector<7x8x32xf32> -> vector<8x8x32xf32>
    %93 = vector.shape_cast %92 : vector<8x8x32xf32> to vector<64x32xf32>
    %94 = vector.extract_strided_slice %64 {offsets = [0, 0, 0], sizes = [7, 8, 32], strides = [1, 1, 1]} : vector<8x8x32xf32> to vector<7x8x32xf32>
    %95 = tpu.concatenate %57, %94 in 0 : vector<1x8x32xf32>, vector<7x8x32xf32> -> vector<8x8x32xf32>
    %96 = vector.extract_strided_slice %95 {offsets = [0, 1, 0], sizes = [8, 7, 32], strides = [1, 1, 1]} : vector<8x8x32xf32> to vector<8x7x32xf32>
    %97 = tpu.concatenate %96, %58 in 1 : vector<8x7x32xf32>, vector<8x1x32xf32> -> vector<8x8x32xf32>
    %98 = vector.shape_cast %97 : vector<8x8x32xf32> to vector<64x32xf32>
    %99 = vector.extract_strided_slice %66 {offsets = [0, 0, 0], sizes = [7, 8, 32], strides = [1, 1, 1]} : vector<8x8x32xf32> to vector<7x8x32xf32>
    %100 = tpu.concatenate %57, %99 in 0 : vector<1x8x32xf32>, vector<7x8x32xf32> -> vector<8x8x32xf32>
    %101 = vector.extract_strided_slice %100 {offsets = [0, 0, 0], sizes = [8, 7, 32], strides = [1, 1, 1]} : vector<8x8x32xf32> to vector<8x7x32xf32>
    %102 = tpu.concatenate %58, %101 in 1 : vector<8x1x32xf32>, vector<8x7x32xf32> -> vector<8x8x32xf32>
    %103 = vector.shape_cast %102 : vector<8x8x32xf32> to vector<64x32xf32>
    %104 = vector.extract_strided_slice %66 {offsets = [0, 0, 0], sizes = [7, 8, 32], strides = [1, 1, 1]} : vector<8x8x32xf32> to vector<7x8x32xf32>
    %105 = tpu.concatenate %57, %104 in 0 : vector<1x8x32xf32>, vector<7x8x32xf32> -> vector<8x8x32xf32>
    %106 = vector.shape_cast %105 : vector<8x8x32xf32> to vector<64x32xf32>
    %107 = vector.shape_cast %64 : vector<8x8x32xf32> to vector<64x32xf32>
    %108 = vector.extract_strided_slice %64 {offsets = [0, 1, 0], sizes = [8, 7, 32], strides = [1, 1, 1]} : vector<8x8x32xf32> to vector<8x7x32xf32>
    %109 = tpu.concatenate %108, %58 in 1 : vector<8x7x32xf32>, vector<8x1x32xf32> -> vector<8x8x32xf32>
    %110 = vector.shape_cast %109 : vector<8x8x32xf32> to vector<64x32xf32>
    %111 = vector.extract_strided_slice %66 {offsets = [0, 0, 0], sizes = [8, 7, 32], strides = [1, 1, 1]} : vector<8x8x32xf32> to vector<8x7x32xf32>
    %112 = tpu.concatenate %58, %111 in 1 : vector<8x1x32xf32>, vector<8x7x32xf32> -> vector<8x8x32xf32>
    %113 = vector.shape_cast %112 : vector<8x8x32xf32> to vector<64x32xf32>
    %114 = vector.shape_cast %66 : vector<8x8x32xf32> to vector<64x32xf32>
    %115 = tpu.concatenate %67, %70, %73, %74, %77, %82, %87, %90, %93, %98, %103, %106, %107, %110, %113, %114 in 1 : vector<64x32xf32>, vector<64x32xf32>, vector<64x32xf32>, vector<64x32xf32>, vector<64x32xf32>, vector<64x32xf32>, vector<64x32xf32>, vector<64x32xf32>, vector<64x32xf32>, vector<64x32xf32>, vector<64x32xf32>, vector<64x32xf32>, vector<64x32xf32>, vector<64x32xf32>, vector<64x32xf32>, vector<64x32xf32> -> vector<64x512xf32>
    %c0_18 = arith.constant 0 : index
    %c0_19 = arith.constant 0 : index
    %116 = vector.load %arg4[%c0_18, %c0_19] : memref<512x12xf32, #tpu.memory_space<vmem>>, vector<512x12xf32>
    %cst_20 = arith.constant dense<0.000000e+00> : vector<64x12xf32>
    %117 = tpu.matmul %115, %116, %cst_20 {dimension_numbers = #tpu.dot_dimension_numbers<[1], [0], [0], [1], [0, 0, 1, 1], [], []>} : vector<64x512xf32>, vector<512x12xf32>, vector<64x12xf32> -> vector<64x12xf32>
    %c0_21 = arith.constant 0 : index
    %c0_22 = arith.constant 0 : index
    %118 = vector.load %arg5[%c0_21, %c0_22] : memref<1x12xf32, #tpu.memory_space<vmem>>, vector<1x12xf32>
    %119 = vector.broadcast %118 : vector<1x12xf32> to vector<64x12xf32>
    %120 = arith.addf %117, %119 : vector<64x12xf32>
    %cst_23 = arith.constant dense<0.000000e+00> : vector<12xf32>
    %121 = vector.multi_reduction <add>, %120, %cst_23 [0] : vector<64x12xf32> to vector<12xf32>
    %122 = vector.shape_cast %121 : vector<12xf32> to vector<1x12xf32>
    %123 = vector.extract_strided_slice %122 {offsets = [0, 0], sizes = [1, 3], strides = [1, 1]} : vector<1x12xf32> to vector<1x3xf32>
    %124 = vector.extract_strided_slice %122 {offsets = [0, 3], sizes = [1, 3], strides = [1, 1]} : vector<1x12xf32> to vector<1x3xf32>
    %125 = arith.addf %123, %124 : vector<1x3xf32>
    %126 = vector.extract_strided_slice %122 {offsets = [0, 6], sizes = [1, 3], strides = [1, 1]} : vector<1x12xf32> to vector<1x3xf32>
    %127 = arith.addf %125, %126 : vector<1x3xf32>
    %128 = vector.extract_strided_slice %122 {offsets = [0, 9], sizes = [1, 3], strides = [1, 1]} : vector<1x12xf32> to vector<1x3xf32>
    %129 = arith.addf %127, %128 : vector<1x3xf32>
    %cst_24 = arith.constant 3.906250e-03 : f32
    %130 = vector.broadcast %cst_24 : f32 to vector<1x3xf32>
    %131 = arith.mulf %129, %130 : vector<1x3xf32>
    %132 = tpu.concatenate %131, %131, %131, %131 in 1 : vector<1x3xf32>, vector<1x3xf32>, vector<1x3xf32>, vector<1x3xf32> -> vector<1x12xf32>
    %133 = vector.broadcast %132 : vector<1x12xf32> to vector<64x12xf32>
    %134 = arith.subf %120, %133 : vector<64x12xf32>
    %135 = arith.mulf %134, %134 : vector<64x12xf32>
    %cst_25 = arith.constant dense<0.000000e+00> : vector<12xf32>
    %136 = vector.multi_reduction <add>, %135, %cst_25 [0] : vector<64x12xf32> to vector<12xf32>
    %137 = vector.shape_cast %136 : vector<12xf32> to vector<1x12xf32>
    %138 = vector.extract_strided_slice %137 {offsets = [0, 0], sizes = [1, 3], strides = [1, 1]} : vector<1x12xf32> to vector<1x3xf32>
    %139 = vector.extract_strided_slice %137 {offsets = [0, 3], sizes = [1, 3], strides = [1, 1]} : vector<1x12xf32> to vector<1x3xf32>
    %140 = arith.addf %138, %139 : vector<1x3xf32>
    %141 = vector.extract_strided_slice %137 {offsets = [0, 6], sizes = [1, 3], strides = [1, 1]} : vector<1x12xf32> to vector<1x3xf32>
    %142 = arith.addf %140, %141 : vector<1x3xf32>
    %143 = vector.extract_strided_slice %137 {offsets = [0, 9], sizes = [1, 3], strides = [1, 1]} : vector<1x12xf32> to vector<1x3xf32>
    %144 = arith.addf %142, %143 : vector<1x3xf32>
    %cst_26 = arith.constant 3.906250e-03 : f32
    %145 = vector.broadcast %cst_26 : f32 to vector<1x3xf32>
    %146 = arith.mulf %144, %145 : vector<1x3xf32>
    %147 = tpu.concatenate %146, %146, %146, %146 in 1 : vector<1x3xf32>, vector<1x3xf32>, vector<1x3xf32>, vector<1x3xf32> -> vector<1x12xf32>
    %cst_27 = arith.constant 9.99999974E-6 : f32
    %148 = vector.broadcast %cst_27 : f32 to vector<1x12xf32>
    %149 = arith.addf %147, %148 : vector<1x12xf32>
    %150 = math.rsqrt %149 : vector<1x12xf32>
    %151 = vector.broadcast %150 : vector<1x12xf32> to vector<64x12xf32>
    %152 = arith.mulf %134, %151 : vector<64x12xf32>
    %cst_28 = arith.constant 0.000000e+00 : f32
    %153 = vector.broadcast %cst_28 : f32 to vector<64x12xf32>
    %154 = arith.subf %153, %152 : vector<64x12xf32>
    %155 = math.exp %154 : vector<64x12xf32>
    %cst_29 = arith.constant 1.000000e+00 : f32
    %156 = vector.broadcast %cst_29 : f32 to vector<64x12xf32>
    %157 = arith.addf %156, %155 : vector<64x12xf32>
    %cst_30 = arith.constant 1.000000e+00 : f32
    %158 = vector.broadcast %cst_30 : f32 to vector<64x12xf32>
    %159 = arith.divf %158, %157 : vector<64x12xf32>
    %160 = vector.shape_cast %159 : vector<64x12xf32> to vector<8x8x12xf32>
    %c0_31 = arith.constant 0 : index
    %c0_32 = arith.constant 0 : index
    %c0_33 = arith.constant 0 : index
    %c0_34 = arith.constant 0 : index
    %161 = vector.load %arg6[%c0_31, %c0_32, %c0_33, %c0_34] : memref<1x8x8x12xf32, #tpu.memory_space<vmem>>, vector<1x8x8x12xf32>
    %162 = vector.shape_cast %161 : vector<1x8x8x12xf32> to vector<8x8x12xf32>
    %163 = vector.shape_cast %160 : vector<8x8x12xf32> to vector<1x8x8x12xf32>
    tpu.vector_store %arg6[%c0_31, %c0_32, %c0_33, %c0_34], %163 {strides = array<i32>} : memref<1x8x8x12xf32, #tpu.memory_space<vmem>>, vector<1x8x8x12xf32>,
    return
  }
  func.func @transform_0(%arg0: i32) -> (i32, i32, i32, i32) {
    %c0_i32 = arith.constant 0 : i32
    %c0_i32_0 = arith.constant 0 : i32
    %c0_i32_1 = arith.constant 0 : i32
    %c0_i32_2 = arith.constant 0 : i32
    return %arg0, %c0_i32, %c0_i32_0, %c0_i32_1 : i32, i32, i32, i32
  }
  func.func @transform_1(%arg0: i32) -> (i32, i32) {
    %c0_i32 = arith.constant 0 : i32
    %c0_i32_0 = arith.constant 0 : i32
    %c0_i32_1 = arith.constant 0 : i32
    return %c0_i32, %c0_i32_0 : i32, i32
  }
  func.func @transform_2(%arg0: i32) -> (i32, i32) {
    %c0_i32 = arith.constant 0 : i32
    %c0_i32_0 = arith.constant 0 : i32
    %c0_i32_1 = arith.constant 0 : i32
    return %c0_i32, %c0_i32_0 : i32, i32
  }
  func.func @transform_3(%arg0: i32) -> (i32, i32) {
    %c0_i32 = arith.constant 0 : i32
    %c0_i32_0 = arith.constant 0 : i32
    %c0_i32_1 = arith.constant 0 : i32
    return %c0_i32, %c0_i32_0 : i32, i32
  }
  func.func @transform_4(%arg0: i32) -> (i32, i32) {
    %c0_i32 = arith.constant 0 : i32
    %c0_i32_0 = arith.constant 0 : i32
    %c0_i32_1 = arith.constant 0 : i32
    return %c0_i32, %c0_i32_0 : i32, i32
  }
  func.func @transform_5(%arg0: i32) -> (i32, i32, i32, i32) {
    %c0_i32 = arith.constant 0 : i32
    %c0_i32_0 = arith.constant 0 : i32
    %c0_i32_1 = arith.constant 0 : i32
    %c0_i32_2 = arith.constant 0 : i32
    return %arg0, %c0_i32, %c0_i32_0, %c0_i32_1 : i32, i32, i32, i32
  }
}

</mosaic_0001>

<llo_original>
// kernel: tile.13
$region0: #{tile.13}
  #allocation0 [shape = 's32[1]{0}', space=sflag, size = 0x4, scoped, tag = 'scoped memory for tile.13']
  %s0 = inlined_call_operand.vmem [shape: f32[32], index: 0, kind: input, shape index: {}]
  %s1 = inlined_call_operand.vmem [shape: f32[4,32], index: 1, kind: output, shape index: {}]
  // Predicated region
  $region2: #{tile.13} parent=0 // pred_check
    _
  $region3: #{tile.13} parent=0 // pred_check_branch
    %3 = sbr.rel (0) target = $region5
  $region4: #{tile.13} parent=0 // pred_region
    _
  $region5: #{tile.13} parent=0 // pred_fallthru
    _
  %v4 = vld [vmem:[%s0] ss:$0 sm:$0xff]
  %5 = vst [vmem:[%s1] sm:$0xf] %v4

// kernel: tile.14
$region0: #{tile.14}
  %s0 = inlined_call_operand.vmem [shape: f32[4,32], index: 0, kind: input, shape index: {}]
  %s1 = inlined_call_operand.vmem [shape: f32[1,128], index: 1, kind: output, shape index: {}]
  $region1: #{tile.14} parent=0
    #allocation0 [shape = 'u8[4096]{0}', space=vmem, size = 0x1000, scoped, tag = 'scoped mem for output reshape']
    #allocation1 [shape = 'u8[4096]{0}', space=vmem, size = 0x1000, scoped, tag = 'scoped mem for input reshape']
    %s3 = sshll.u32 1, 4
    %s4 = ssub.s32 %s3, 1
    %v5 = vld [vmem:[%s0] sm:%s4]
    %6 = vst [vmem:[#allocation1] sm:%s4] %v5
    %v7 = vld [vmem:[#allocation1] sm:$0x1]
    %vm8 = vcmask 261120
    %9 = vst.msk [vmem:[#allocation0] sm:$0x1] %vm8, %v7
    %s10 = scalar_lea.vmem [#allocation1], 3
    %v11 = vld [vmem:[%s10] sm:$0x1]
    %12 = vrot.lane.b32.xlu0 %v11, 96
    %v13 = vpop.permute.xlu0 %12
    %vm14 = vcmask 1048320
    %15 = vst.msk [vmem:[#allocation0] sm:$0x1] %vm14, %v13
    %s16 = scalar_lea.vmem [#allocation1], 2
    %v17 = vld [vmem:[%s16] sm:$0x1]
    %18 = vrot.lane.b32.xlu0 %v17, 64
    %v19 = vpop.permute.xlu0 %18
    %vm20 = vcmask 785920
    %21 = vst.msk [vmem:[#allocation0] sm:$0x1] %vm20, %v19
    %s22 = scalar_lea.vmem [#allocation1], 1
    %v23 = vld [vmem:[%s22] sm:$0x1]
    %24 = vrot.lane.b32.xlu0 %v23, 32
    %v25 = vpop.permute.xlu0 %24
    %vm26 = vcmask 523520
    %27 = vst.msk [vmem:[#allocation0] sm:$0x1] %vm26, %v25
    %s29 = sshll.u32 1, 1
    %s30 = ssub.s32 %s29, 1
    %v32 = vld [vmem:[#allocation0] sm:%s30]
    %s33 = sshll.u32 1, 1
    %s34 = ssub.s32 %s33, 1
    %35 = vst [vmem:[%s1] sm:%s34] %v32

// kernel: tile.18
$region0: #{tile.18}
  #allocation0 [shape = 's32[1]{0}', space=sflag, size = 0x4, scoped, tag = 'scoped memory for tile.18']
  %s0 = inlined_call_operand.vmem [shape: f32[3], index: 0, kind: input, shape index: {}]
  %s1 = inlined_call_operand.vmem [shape: f32[4,3], index: 1, kind: output, shape index: {}]
  // Predicated region
  $region2: #{tile.18} parent=0 // pred_check
    _
  $region3: #{tile.18} parent=0 // pred_check_branch
    %3 = sbr.rel (0) target = $region5
  $region4: #{tile.18} parent=0 // pred_region
    _
  $region5: #{tile.18} parent=0 // pred_fallthru
    _
  %v4 = vld [vmem:[%s0] ss:$0 sm:$0xff]
  %5 = vst [vmem:[%s1] sm:$0xf] %v4

// kernel: tile.19
$region0: #{tile.19}
  %s0 = inlined_call_operand.vmem [shape: f32[4,3], index: 0, kind: input, shape index: {}]
  %s1 = inlined_call_operand.vmem [shape: f32[1,12], index: 1, kind: output, shape index: {}]
  $region1: #{tile.19} parent=0
    #allocation0 [shape = 'u8[4096]{0}', space=vmem, size = 0x1000, scoped, tag = 'scoped mem for output reshape']
    #allocation1 [shape = 'u8[4096]{0}', space=vmem, size = 0x1000, scoped, tag = 'scoped mem for input reshape']
    %s3 = sshll.u32 1, 4
    %s4 = ssub.s32 %s3, 1
    %v5 = vld [vmem:[%s0] sm:%s4]
    %6 = vst [vmem:[#allocation1] sm:%s4] %v5
    %v7 = vld [vmem:[#allocation1] sm:$0x1]
    %vm8 = vcmask 23552
    %9 = vst.msk [vmem:[#allocation0] sm:$0x1] %vm8, %v7
    %s10 = scalar_lea.vmem [#allocation1], 3
    %v11 = vld [vmem:[%s10] sm:$0x1]
    %12 = vrot.lane.b32.xlu0 %v11, 9
    %v13 = vpop.permute.xlu0 %12
    %vm14 = vcmask 97352
    %15 = vst.msk [vmem:[#allocation0] sm:$0x1] %vm14, %v13
    %s16 = scalar_lea.vmem [#allocation1], 2
    %v17 = vld [vmem:[%s16] sm:$0x1]
    %18 = vrot.lane.b32.xlu0 %v17, 6
    %v19 = vpop.permute.xlu0 %18
    %vm20 = vcmask 72752
    %21 = vst.msk [vmem:[#allocation0] sm:$0x1] %vm20, %v19
    %s22 = scalar_lea.vmem [#allocation1], 1
    %v23 = vld [vmem:[%s22] sm:$0x1]
    %24 = vrot.lane.b32.xlu0 %v23, 3
    %v25 = vpop.permute.xlu0 %24
    %vm26 = vcmask 48152
    %27 = vst.msk [vmem:[#allocation0] sm:$0x1] %vm26, %v25
    %s29 = sshll.u32 1, 1
    %s30 = ssub.s32 %s29, 1
    %v32 = vld [vmem:[#allocation0] sm:%s30]
    %s33 = sshll.u32 1, 1
    %s34 = ssub.s32 %s33, 1
    %35 = vst [vmem:[%s1] sm:%s34] %v32

// kernel: decoder_forward.1
$region0: #{decoder_forward.1}
  #allocation0 [shape = 'u32[]', space=smem, size = 0x4, offset = 0x4, fixed_abs, tag = 'smem constant byte address 0x4 - core index']
  #allocation1 [shape = 'u32[144,128]{1,0:T(1,128)}', space=vmem, size = 0x12000, scoped, tag = 'internal scratch']
  %s0 = inlined_call_operand.vmem [shape: f32[2,8,8,64], index: 0, kind: input, shape index: {}]
  %s1 = inlined_call_operand.vmem [shape: f32[256,128], index: 1, kind: input, shape index: {}]
  %s2 = inlined_call_operand.vmem [shape: f32[1,128], index: 2, kind: input, shape index: {}]
  %s3 = inlined_call_operand.vmem [shape: f32[512,12], index: 3, kind: input, shape index: {}]
  %s4 = inlined_call_operand.vmem [shape: f32[1,12], index: 4, kind: input, shape index: {}]
  %s5 = inlined_call_operand.vmem [shape: f32[2,8,8,12], index: 5, kind: output, shape index: {}]
  %s6 = sld [smem:[#allocation0]]
  $region53: #{decoder_forward.1} parent=0
    _
  %s8 = ssub.s32 1, %s6
  %s9 = scalar_select 0, %s8, %s6
  loop: start=0, step=1, limit=4
  $region2: #{decoder_forward.1} parent=0 // loop_pre_header
    _
  $region3: #{decoder_forward.1} parent=0 // loop_header
    %s11 = sphi 0, %s15
    %p12 = scmp.ge.s32.totalorder %s11, 4
    %s21 = sphi 0, %s23
    %s24 = sphi 0, %s21
    %s25 = sphi 0, %s24
    %s41 = sphi 0, %s25
    %s45 = sphi 0, %s45
    %s47 = sphi 0, %s45
    %s48 = sphi 0, %s47
    %s62 = sphi 0, %s48
    %s66 = sphi 0, %s66
    %s68 = sphi 0, %s66
    %s69 = sphi 0, %s68
    %s83 = sphi 0, %s69
    %s87 = sphi 0, %s87
    %s89 = sphi 0, %s87
    %s90 = sphi 0, %s89
    %s104 = sphi 0, %s90
    %s108 = sphi 0, %s108
    %s110 = sphi 0, %s108
    %s111 = sphi 0, %s110
    %s125 = sphi 0, %s111
    %s131 = sphi 0, %s133
    %s134 = sphi 0, %s131
    %s135 = sphi 0, %s134
    %s151 = sphi 0, %s135
  $region4: #{decoder_forward.1} parent=0 // loop_header_branch
    %14 = sbr.rel (%p12) target = $region8
  $region5: #{decoder_forward.1} parent=0 // loop_body
    %s16 = ssub.s32 %s11, 1
    %s17 = ssub.s32 %s11, 2
    %s18 = sadd.s32 %s11, 1
    %s19 = ssub.s32 %s11, %s18
    %p20 = scmp.eq.s32.totalorder %s19, 0
    %s22 = sadd.s32 %s21, 1
    %s23 = scalar_select %p20, %s21, %s22
    %p26 = pneg %p20
    %p27 = scmp.eq.s32.totalorder %s11, 1
    %p28 = por %p26, %p27
    %p29 = scmp.ne.s32.totalorder %s21, %s24
    %p30 = scmp.eq.s32.totalorder %s11, 0
    %p31 = por %p29, %p30
    %p32 = scmp.ne.s32.totalorder %s21, %s24
    %p33 = scmp.eq.s32.totalorder %s16, 1
    %p34 = por %p32, %p33
    %p35 = scmp.ne.s32.totalorder %s24, %s25
    %p36 = scmp.eq.s32.totalorder %s16, 0
    %p37 = por %p35, %p36
    %p38 = scmp.ne.s32.totalorder %s24, %s25
    %p39 = scmp.eq.s32.totalorder %s17, 1
    %p40 = por %p38, %p39
    %p42 = scmp.ne.s32.totalorder %s25, %s41
    %p43 = scmp.eq.s32.totalorder %s17, 0
    %p44 = por %p42, %p43
    %s46 = sadd.s32 %s45, 1
    %p49 = scmp.eq.s32.totalorder %s11, 1
    %p50 = scmp.ne.s32.totalorder %s45, %s47
    %p51 = scmp.eq.s32.totalorder %s11, 0
    %p52 = por %p50, %p51
    %p53 = scmp.ne.s32.totalorder %s45, %s47
    %p54 = scmp.eq.s32.totalorder %s16, 1
    %p55 = por %p53, %p54
    %p56 = scmp.ne.s32.totalorder %s47, %s48
    %p57 = scmp.eq.s32.totalorder %s16, 0
    %p58 = por %p56, %p57
    %p59 = scmp.ne.s32.totalorder %s47, %s48
    %p60 = scmp.eq.s32.totalorder %s17, 1
    %p61 = por %p59, %p60
    %p63 = scmp.ne.s32.totalorder %s48, %s62
    %p64 = scmp.eq.s32.totalorder %s17, 0
    %p65 = por %p63, %p64
    %s67 = sadd.s32 %s66, 1
    %p70 = scmp.eq.s32.totalorder %s11, 1
    %p71 = scmp.ne.s32.totalorder %s66, %s68
    %p72 = scmp.eq.s32.totalorder %s11, 0
    %p73 = por %p71, %p72
    %p74 = scmp.ne.s32.totalorder %s66, %s68
    %p75 = scmp.eq.s32.totalorder %s16, 1
    %p76 = por %p74, %p75
    %p77 = scmp.ne.s32.totalorder %s68, %s69
    %p78 = scmp.eq.s32.totalorder %s16, 0
    %p79 = por %p77, %p78
    %p80 = scmp.ne.s32.totalorder %s68, %s69
    %p81 = scmp.eq.s32.totalorder %s17, 1
    %p82 = por %p80, %p81
    %p84 = scmp.ne.s32.totalorder %s69, %s83
    %p85 = scmp.eq.s32.totalorder %s17, 0
    %p86 = por %p84, %p85
    %s88 = sadd.s32 %s87, 1
    %p91 = scmp.eq.s32.totalorder %s11, 1
    %p92 = scmp.ne.s32.totalorder %s87, %s89
    %p93 = scmp.eq.s32.totalorder %s11, 0
    %p94 = por %p92, %p93
    %p95 = scmp.ne.s32.totalorder %s87, %s89
    %p96 = scmp.eq.s32.totalorder %s16, 1
    %p97 = por %p95, %p96
    %p98 = scmp.ne.s32.totalorder %s89, %s90
    %p99 = scmp.eq.s32.totalorder %s16, 0
    %p100 = por %p98, %p99
    %p101 = scmp.ne.s32.totalorder %s89, %s90
    %p102 = scmp.eq.s32.totalorder %s17, 1
    %p103 = por %p101, %p102
    %p105 = scmp.ne.s32.totalorder %s90, %s104
    %p106 = scmp.eq.s32.totalorder %s17, 0
    %p107 = por %p105, %p106
    %s109 = sadd.s32 %s108, 1
    %p112 = scmp.eq.s32.totalorder %s11, 1
    %p113 = scmp.ne.s32.totalorder %s108, %s110
    %p114 = scmp.eq.s32.totalorder %s11, 0
    %p115 = por %p113, %p114
    %p116 = scmp.ne.s32.totalorder %s108, %s110
    %p117 = scmp.eq.s32.totalorder %s16, 1
    %p118 = por %p116, %p117
    %p119 = scmp.ne.s32.totalorder %s110, %s111
    %p120 = scmp.eq.s32.totalorder %s16, 0
    %p121 = por %p119, %p120
    %p122 = scmp.ne.s32.totalorder %s110, %s111
    %p123 = scmp.eq.s32.totalorder %s17, 1
    %p124 = por %p122, %p123
    %p126 = scmp.ne.s32.totalorder %s111, %s125
    %p127 = scmp.eq.s32.totalorder %s17, 0
    %p128 = por %p126, %p127
    %s129 = ssub.s32 %s11, %s18
    %p130 = scmp.eq.s32.totalorder %s129, 0
    %s132 = sadd.s32 %s131, 1
    %s133 = scalar_select %p130, %s131, %s132
    %p136 = pneg %p130
    %p137 = scmp.eq.s32.totalorder %s11, 1
    %p138 = por %p136, %p137
    %p139 = scmp.ne.s32.totalorder %s131, %s134
    %p140 = scmp.eq.s32.totalorder %s11, 0
    %p141 = por %p139, %p140
    %p142 = scmp.ne.s32.totalorder %s131, %s134
    %p143 = scmp.eq.s32.totalorder %s16, 1
    %p144 = por %p142, %p143
    %p145 = scmp.ne.s32.totalorder %s134, %s135
    %p146 = scmp.eq.s32.totalorder %s16, 0
    %p147 = por %p145, %p146
    %p148 = scmp.ne.s32.totalorder %s134, %s135
    %p149 = scmp.eq.s32.totalorder %s17, 1
    %p150 = por %p148, %p149
    %p152 = scmp.ne.s32.totalorder %s135, %s151
    %p153 = scmp.eq.s32.totalorder %s17, 0
    %p154 = por %p152, %p153
    %p155 = scmp.le.s32.totalorder 1, %s11
    %p156 = scmp.lt.s32.totalorder %s11, 3
    %p157 = pnand %p155, %p156
    %p158 = pneg %p157
    // Predicated region
    $region9: #{decoder_forward.1} parent=5 // pred_check
      _
    $region10: #{decoder_forward.1} parent=5 // pred_check_branch
      %160 = sbr.rel (%p157) target = $region12
    $region11: #{decoder_forward.1} parent=5 // pred_region
      %s161 = ssub.s32 %s11, 1
      // Predicated region
      $region13: #{decoder_forward.1} parent=11 // pred_check
        %p162 = pneg %p58
      $region14: #{decoder_forward.1} parent=11 // pred_check_branch
        %164 = sbr.rel (%p162) target = $region16
      $region15: #{decoder_forward.1} parent=11 // pred_region
        _
      $region16: #{decoder_forward.1} parent=11 // pred_fallthru
        _
      // Predicated region
      $region17: #{decoder_forward.1} parent=11 // pred_check
        %p165 = pneg %p79
      $region18: #{decoder_forward.1} parent=11 // pred_check_branch
        %167 = sbr.rel (%p165) target = $region20
      $region19: #{decoder_forward.1} parent=11 // pred_region
        _
      $region20: #{decoder_forward.1} parent=11 // pred_fallthru
        _
      // Predicated region
      $region21: #{decoder_forward.1} parent=11 // pred_check
        %p168 = pneg %p100
      $region22: #{decoder_forward.1} parent=11 // pred_check_branch
        %170 = sbr.rel (%p168) target = $region24
      $region23: #{decoder_forward.1} parent=11 // pred_region
        _
      $region24: #{decoder_forward.1} parent=11 // pred_fallthru
        _
      // Predicated region
      $region25: #{decoder_forward.1} parent=11 // pred_check
        %p171 = pneg %p121
      $region26: #{decoder_forward.1} parent=11 // pred_check_branch
        %173 = sbr.rel (%p171) target = $region28
      $region27: #{decoder_forward.1} parent=11 // pred_region
        _
      $region28: #{decoder_forward.1} parent=11 // pred_fallthru
        _
    $region12: #{decoder_forward.1} parent=5 // pred_fallthru
      _
    %p174 = scmp.lt.s32.totalorder %s11, 2
    // Predicated region
    $region29: #{decoder_forward.1} parent=5 // pred_check
      %p175 = pneg %p174
    $region30: #{decoder_forward.1} parent=5 // pred_check_branch
      %177 = sbr.rel (%p175) target = $region32
    $region31: #{decoder_forward.1} parent=5 // pred_region
      // Predicated region
      $region33: #{decoder_forward.1} parent=31 // pred_check
        %p178 = pneg %p31
      $region34: #{decoder_forward.1} parent=31 // pred_check_branch
        %180 = sbr.rel (%p178) target = $region36
      $region35: #{decoder_forward.1} parent=31 // pred_region
        %p181 = scmp.lt.s32.totalorder %s11, 1
        %s182 = scalar_select %p181, %s11, 1
        %s183 = smul.addr %s182, 8
        %s184 = smul.addr %s183, 8
        %s185 = scalar_lea.vmem %s0, %s184
      $region36: #{decoder_forward.1} parent=31 // pred_fallthru
        _
    $region32: #{decoder_forward.1} parent=5 // pred_fallthru
      _
    %p186 = scmp.le.s32.totalorder 1, %s11
    %p187 = scmp.lt.s32.totalorder %s11, 3
    %p188 = pnand %p186, %p187
    %p189 = pneg %p188
    // Predicated region
    $region37: #{decoder_forward.1} parent=5 // pred_check
      _
    $region38: #{decoder_forward.1} parent=5 // pred_check_branch
      %191 = sbr.rel (%p188) target = $region40
    $region39: #{decoder_forward.1} parent=5 // pred_region
      %s192 = ssub.s32 %s11, 1
      %p193 = scmp.lt.s32.totalorder %s16, 1
      %s194 = scalar_select %p193, %s16, 1
      %s195 = smul.addr %s194, 8
      %s196 = smul.addr %s195, 8
      %s197 = scalar_lea.vmem %s0, %s196
      %p198 = pneg %p37
      %p199 = pneg %p34
      %p200 = pneg %p58
      %p201 = pneg %p55
      %p202 = pneg %p79
      %p203 = pneg %p76
      %p204 = pneg %p100
      %p205 = pneg %p97
      %p206 = pneg %p121
      %p207 = pneg %p118
      %p208 = pneg %p147
      %p209 = pneg %p144
      %p210 = scmp.lt.s32.totalorder %s16, 1
      %s211 = scalar_select %p210, %s16, 1
      %s212 = smul.addr %s211, 8
      %s213 = smul.addr %s212, 8
      %s214 = scalar_lea.vmem %s5, %s213
      %p215 = scmp.lt.s32.totalorder %s16, 1
      %s216 = scalar_select %p215, %s16, 1
      %s217 = smul.addr %s216, 8
      %s218 = smul.addr %s217, 8
      %s219 = scalar_lea.vmem %s0, %s218
      %p220 = scmp.lt.s32.totalorder %s16, 1
      %s221 = scalar_select %p220, %s16, 1
      %s222 = smul.addr %s221, 8
      %s223 = smul.addr %s222, 8
      %s224 = scalar_lea.vmem %s5, %s223
      %v225 = vld [vmem:[%s219] sm:$0xff]
      %v226 = vld [vmem:[%s219 + $0x8] sm:$0xff]
      %v227 = vld [vmem:[%s219 + $0x10] sm:$0xff]
      %v228 = vld [vmem:[%s219 + $0x18] sm:$0xff]
      %v229 = vld [vmem:[%s219 + $0x20] sm:$0xff]
      %v230 = vld [vmem:[%s219 + $0x28] sm:$0xff]
      %v231 = vld [vmem:[%s219 + $0x30] sm:$0xff]
      %v232 = vld [vmem:[%s219 + $0x38] sm:$0xff]
      %v241 = vrot.slane %v225, 1
      %v242 = vrot.slane %v226, 1
      %v243 = vrot.slane %v227, 1
      %v244 = vrot.slane %v228, 1
      %v245 = vrot.slane %v229, 1
      %v246 = vrot.slane %v230, 1
      %v247 = vrot.slane %v231, 1
      %v248 = vrot.slane %v232, 1
      %vm257 = vcmask 1046528
      %v258 = vsel %vm257, %v241, 0.0
      %v259 = vsel %vm257, %v242, 0.0
      %v260 = vsel %vm257, %v243, 0.0
      %v261 = vsel %vm257, %v244, 0.0
      %v262 = vsel %vm257, %v245, 0.0
      %v263 = vsel %vm257, %v246, 0.0
      %v264 = vsel %vm257, %v247, 0.0
      %v265 = vsel %vm257, %v248, 0.0
      %v267 = vrot.slane 0.0, 1
      %v269 = vsel %vm257, %v267, 0.0
      %278 = vrot.lane.b32.xlu0 %v258, 64
      %v279 = vpop.permute.xlu0 %278
      %280 = vrot.lane.b32.xlu0 %v259, 64
      %v281 = vpop.permute.xlu0 %280
      %282 = vrot.lane.b32.xlu0 %v260, 64
      %v283 = vpop.permute.xlu0 %282
      %284 = vrot.lane.b32.xlu0 %v261, 64
      %v285 = vpop.permute.xlu0 %284
      %286 = vrot.lane.b32.xlu0 %v262, 64
      %v287 = vpop.permute.xlu0 %286
      %288 = vrot.lane.b32.xlu0 %v263, 64
      %v289 = vpop.permute.xlu0 %288
      %290 = vrot.lane.b32.xlu0 %v264, 64
      %v291 = vpop.permute.xlu0 %290
      %292 = vrot.lane.b32.xlu0 %v265, 64
      %v293 = vpop.permute.xlu0 %292
      %303 = vrot.lane.b32.xlu0 %v269, 64
      %v304 = vpop.permute.xlu0 %303
      %vm306 = vcmask 523264
      %v307 = vsel %vm306, %v225, %v279
      %v308 = vsel %vm306, %v226, %v281
      %v309 = vsel %vm306, %v227, %v283
      %v310 = vsel %vm306, %v228, %v285
      %v311 = vsel %vm306, %v229, %v287
      %v312 = vsel %vm306, %v230, %v289
      %v313 = vsel %vm306, %v231, %v291
      %v314 = vsel %vm306, %v232, %v293
      %v315 = vsel %vm306, 0.0, %v304
      %v316 = vld [vmem:[%s1] sm:$0xff]
      %v317 = vld [vmem:[%s1 + $0x8] sm:$0xff]
      %v318 = vld [vmem:[%s1 + $0x10] sm:$0xff]
      %v319 = vld [vmem:[%s1 + $0x18] sm:$0xff]
      %v320 = vld [vmem:[%s1 + $0x20] sm:$0xff]
      %v321 = vld [vmem:[%s1 + $0x28] sm:$0xff]
      %v322 = vld [vmem:[%s1 + $0x30] sm:$0xff]
      %v323 = vld [vmem:[%s1 + $0x38] sm:$0xff]
      %v324 = vld [vmem:[%s1 + $0x40] sm:$0xff]
      %v325 = vld [vmem:[%s1 + $0x48] sm:$0xff]
      %v326 = vld [vmem:[%s1 + $0x50] sm:$0xff]
      %v327 = vld [vmem:[%s1 + $0x58] sm:$0xff]
      %v328 = vld [vmem:[%s1 + $0x60] sm:$0xff]
      %v329 = vld [vmem:[%s1 + $0x68] sm:$0xff]
      %v330 = vld [vmem:[%s1 + $0x70] sm:$0xff]
      %v331 = vld [vmem:[%s1 + $0x78] sm:$0xff]
      %v332 = vld [vmem:[%s1 + $0x80] sm:$0xff]
      %v333 = vld [vmem:[%s1 + $0x88] sm:$0xff]
      %v334 = vld [vmem:[%s1 + $0x90] sm:$0xff]
      %v335 = vld [vmem:[%s1 + $0x98] sm:$0xff]
      %v336 = vld [vmem:[%s1 + $0xa0] sm:$0xff]
      %v337 = vld [vmem:[%s1 + $0xa8] sm:$0xff]
      %v338 = vld [vmem:[%s1 + $0xb0] sm:$0xff]
      %v339 = vld [vmem:[%s1 + $0xb8] sm:$0xff]
      %v340 = vld [vmem:[%s1 + $0xc0] sm:$0xff]
      %v341 = vld [vmem:[%s1 + $0xc8] sm:$0xff]
      %v342 = vld [vmem:[%s1 + $0xd0] sm:$0xff]
      %v343 = vld [vmem:[%s1 + $0xd8] sm:$0xff]
      %v344 = vld [vmem:[%s1 + $0xe0] sm:$0xff]
      %v345 = vld [vmem:[%s1 + $0xe8] sm:$0xff]
      %v346 = vld [vmem:[%s1 + $0xf0] sm:$0xff]
      %v347 = vld [vmem:[%s1 + $0xf8] sm:$0xff]
      %v348 = vld [vmem:[%s2] sm:$0x1]
      %v350 = vlaneseq
      %v351 = vshrl.u32 %v350, 7
      %v352 = vsub.s32 0, %v351
      %v353 = vrot.slane %v348, %v352
      %355 = vmatprep.subr.mxu0 0.0
      %356 = vmatpush1.msra.mxu0 %v331
      %357 = vmatprep.subr.mxu0 0.0
      %358 = vmatpush1.msra.mxu0 %v330
      %359 = vmatprep.subr.mxu0 0.0
      %360 = vmatpush1.msra.mxu0 %v329
      %361 = vmatprep.subr.mxu0 0.0
      %362 = vmatpush1.msra.mxu0 %v328
      %363 = vmatprep.subr.mxu0 0.0
      %364 = vmatpush1.msra.mxu0 %v327
      %365 = vmatprep.subr.mxu0 0.0
      %366 = vmatpush1.msra.mxu0 %v326
      %367 = vmatprep.subr.mxu0 0.0
      %368 = vmatpush1.msra.mxu0 %v325
      %369 = vmatprep.subr.mxu0 0.0
      %370 = vmatpush1.msra.mxu0 %v324
      %371 = vmatprep.subr.mxu0 0.0
      %372 = vmatpush1.msra.mxu0 %v323
      %373 = vmatprep.subr.mxu0 0.0
      %374 = vmatpush1.msra.mxu0 %v322
      %375 = vmatprep.subr.mxu0 0.0
      %376 = vmatpush1.msra.mxu0 %v321
      %377 = vmatprep.subr.mxu0 0.0
      %378 = vmatpush1.msra.mxu0 %v320
      %379 = vmatprep.subr.mxu0 0.0
      %380 = vmatpush1.msra.mxu0 %v319
      %381 = vmatprep.subr.mxu0 0.0
      %382 = vmatpush1.msra.mxu0 %v318
      %383 = vmatprep.subr.mxu0 0.0
      %384 = vmatpush1.msra.mxu0 %v317
      %385 = vmatprep.subr.mxu0 0.0
      %386 = vmatpush1.msra.mxu0 %v316
      %387 = vmatprep.subr.mxu0 0.0
      %388 = vmatpush2.msra.mxu0 %v347
      %389 = vmatprep.subr.mxu0 0.0
      %390 = vmatpush2.msra.mxu0 %v346
      %391 = vmatprep.subr.mxu0 0.0
      %392 = vmatpush2.msra.mxu0 %v345
      %393 = vmatprep.subr.mxu0 0.0
      %394 = vmatpush2.msra.mxu0 %v344
      %395 = vmatprep.subr.mxu0 0.0
      %396 = vmatpush2.msra.mxu0 %v343
      %397 = vmatprep.subr.mxu0 0.0
      %398 = vmatpush2.msra.mxu0 %v342
      %399 = vmatprep.subr.mxu0 0.0
      %400 = vmatpush2.msra.mxu0 %v341
      %401 = vmatprep.subr.mxu0 0.0
      %402 = vmatpush2.msra.mxu0 %v340
      %403 = vmatprep.subr.mxu0 0.0
      %404 = vmatpush2.msra.mxu0 %v339
      %405 = vmatprep.subr.mxu0 0.0
      %406 = vmatpush2.msra.mxu0 %v338
      %407 = vmatprep.subr.mxu0 0.0
      %408 = vmatpush2.msra.mxu0 %v337
      %409 = vmatprep.subr.mxu0 0.0
      %410 = vmatpush2.msra.mxu0 %v336
      %411 = vmatprep.subr.mxu0 0.0
      %412 = vmatpush2.msra.mxu0 %v335
      %413 = vmatprep.subr.mxu0 0.0
      %414 = vmatpush2.msra.mxu0 %v334
      %415 = vmatprep.subr.mxu0 0.0
      %416 = vmatpush2.msra.mxu0 %v333
      %417 = vmatprep.subr.mxu0 0.0
      %418 = vmatpush2.msra.mxu0 %v332
      %419 = vmatprep.mubr.f32.mxu0 %v308
      %420 = vmatmul.mubr.f32.gmra.mxu0 %v307
      %v421 = vpop.f32.mrf.mxu0
      %v422 = vadd.f32 %v353, %v421
      %v423 = vpop.f32.mrf.mxu0
      %424 = vmatprep.mubr.f32.mxu0 %v309
      %425 = vmatmul.mubr.f32.gmra.mxu0 %v308
      %v426 = vpop.f32.mrf.mxu0
      %v427 = vadd.f32 %v353, %v426
      %v428 = vpop.f32.mrf.mxu0
      %429 = vmatprep.mubr.f32.mxu0 %v310
      %430 = vmatmul.mubr.f32.gmra.mxu0 %v309
      %v431 = vpop.f32.mrf.mxu0
      %v432 = vadd.f32 %v353, %v431
      %v433 = vpop.f32.mrf.mxu0
      %434 = vmatprep.mubr.f32.mxu0 %v311
      %435 = vmatmul.mubr.f32.gmra.mxu0 %v310
      %v436 = vpop.f32.mrf.mxu0
      %v437 = vadd.f32 %v353, %v436
      %v438 = vpop.f32.mrf.mxu0
      %439 = vmatprep.mubr.f32.mxu0 %v312
      %440 = vmatmul.mubr.f32.gmra.mxu0 %v311
      %v441 = vpop.f32.mrf.mxu0
      %v442 = vadd.f32 %v353, %v441
      %v443 = vpop.f32.mrf.mxu0
      %444 = vmatprep.mubr.f32.mxu0 %v313
      %445 = vmatmul.mubr.f32.gmra.mxu0 %v312
      %v446 = vpop.f32.mrf.mxu0
      %v447 = vadd.f32 %v353, %v446
      %v448 = vpop.f32.mrf.mxu0
      %449 = vmatprep.mubr.f32.mxu0 %v314
      %450 = vmatmul.mubr.f32.gmra.mxu0 %v313
      %v451 = vpop.f32.mrf.mxu0
      %v452 = vadd.f32 %v353, %v451
      %v453 = vpop.f32.mrf.mxu0
      %454 = vmatprep.mubr.f32.mxu0 %v315
      %455 = vmatmul.mubr.f32.gmra.mxu0 %v314
      %v456 = vpop.f32.mrf.mxu0
      %v457 = vadd.f32 %v353, %v456
      %v458 = vpop.f32.mrf.mxu0
      %459 = vdwg.mxu0
      %v460 = vadd.f32 %v422, %v427
      %v461 = vadd.f32 %v460, %v432
      %v462 = vadd.f32 %v461, %v437
      %v463 = vadd.f32 %v462, %v442
      %v464 = vadd.f32 %v463, %v447
      %v465 = vadd.f32 %v464, %v452
      %v466 = vadd.f32 %v465, %v457
      %v467 = vrot.slane %v466, 4
      %v468 = vadd.f32 %v466, %v467
      %v469 = vrot.slane %v468, 2
      %v470 = vadd.f32 %v468, %v469
      %v471 = vrot.slane %v470, 1
      %v472 = vadd.f32 %v470, %v471
      %474 = vrot.lane.b32.xlu0 %v472, 96
      %v475 = vpop.permute.xlu0 %474
      %v477 = vadd.f32 %v472, %v475
      %478 = vrot.lane.b32.xlu0 %v472, 64
      %v479 = vpop.permute.xlu0 %478
      %v481 = vadd.f32 %v477, %v479
      %482 = vrot.lane.b32.xlu0 %v472, 32
      %v483 = vpop.permute.xlu0 %482
      %v485 = vadd.f32 %v481, %v483
      %v486 = vmul.f32 %v485, 0.00390625
      %488 = vrot.lane.b32.xlu0 %v486, 32
      %v489 = vpop.permute.xlu0 %488
      %491 = vrot.lane.b32.xlu0 %v486, 64
      %v492 = vpop.permute.xlu0 %491
      %494 = vrot.lane.b32.xlu0 %v486, 96
      %v495 = vpop.permute.xlu0 %494
      %vm497 = vcmask 261120
      %v498 = vsel %vm497, %v486, %v489
      %v499 = vsel %vm306, %v498, %v492
      %vm500 = vcmask 785408
      %v501 = vsel %vm500, %v499, %v495
      %v502 = vlaneseq
      %v503 = vshrl.u32 %v502, 7
      %v504 = vsub.s32 0, %v503
      %v505 = vrot.slane %v501, %v504
      %v506 = vsub.f32 %v422, %v505
      %v507 = vsub.f32 %v427, %v505
      %v508 = vsub.f32 %v432, %v505
      %v509 = vsub.f32 %v437, %v505
      %v510 = vsub.f32 %v442, %v505
      %v511 = vsub.f32 %v447, %v505
      %v512 = vsub.f32 %v452, %v505
      %v513 = vsub.f32 %v457, %v505
      %v514 = vmul.f32 %v506, %v506
      %v515 = vmul.f32 %v507, %v507
      %v516 = vmul.f32 %v508, %v508
      %v517 = vmul.f32 %v509, %v509
      %v518 = vmul.f32 %v510, %v510
      %v519 = vmul.f32 %v511, %v511
      %v520 = vmul.f32 %v512, %v512
      %v521 = vmul.f32 %v513, %v513
      %v522 = vadd.f32 %v514, %v515
      %v523 = vadd.f32 %v522, %v516
      %v524 = vadd.f32 %v523, %v517
      %v525 = vadd.f32 %v524, %v518
      %v526 = vadd.f32 %v525, %v519
      %v527 = vadd.f32 %v526, %v520
      %v528 = vadd.f32 %v527, %v521
      %v529 = vrot.slane %v528, 4
      %v530 = vadd.f32 %v528, %v529
      %v531 = vrot.slane %v530, 2
      %v532 = vadd.f32 %v530, %v531
      %v533 = vrot.slane %v532, 1
      %v534 = vadd.f32 %v532, %v533
      %536 = vrot.lane.b32.xlu0 %v534, 96
      %v537 = vpop.permute.xlu0 %536
      %v539 = vadd.f32 %v534, %v537
      %540 = vrot.lane.b32.xlu0 %v534, 64
      %v541 = vpop.permute.xlu0 %540
      %v543 = vadd.f32 %v539, %v541
      %544 = vrot.lane.b32.xlu0 %v534, 32
      %v545 = vpop.permute.xlu0 %544
      %v547 = vadd.f32 %v543, %v545
      %v548 = vmul.f32 %v547, 0.00390625
      %550 = vrot.lane.b32.xlu0 %v548, 32
      %v551 = vpop.permute.xlu0 %550
      %553 = vrot.lane.b32.xlu0 %v548, 64
      %v554 = vpop.permute.xlu0 %553
      %556 = vrot.lane.b32.xlu0 %v548, 96
      %v557 = vpop.permute.xlu0 %556
      %v559 = vsel %vm497, %v548, %v551
      %v560 = vsel %vm306, %v559, %v554
      %v561 = vsel %vm500, %v560, %v557
      %v562 = vadd.f32 %v561, 1e-05
      %v563 = vrsqrt.pop %v562
      %v564 = vlaneseq
      %v565 = vshrl.u32 %v564, 7
      %v566 = vsub.s32 0, %v565
      %v567 = vrot.slane %v563, %v566
      %v568 = vmul.f32 %v506, %v567
      %v569 = vmul.f32 %v507, %v567
      %v570 = vmul.f32 %v508, %v567
      %v571 = vmul.f32 %v509, %v567
      %v572 = vmul.f32 %v510, %v567
      %v573 = vmul.f32 %v511, %v567
      %v574 = vmul.f32 %v512, %v567
      %v575 = vmul.f32 %v513, %v567
      %vm576 = vcmp.ge.f32.partialorder %v568, 0.0
      %vm577 = vcmp.ge.f32.partialorder %v569, 0.0
      %vm578 = vcmp.ge.f32.partialorder %v570, 0.0
      %vm579 = vcmp.ge.f32.partialorder %v571, 0.0
      %vm580 = vcmp.ge.f32.partialorder %v572, 0.0
      %vm581 = vcmp.ge.f32.partialorder %v573, 0.0
      %vm582 = vcmp.ge.f32.partialorder %v574, 0.0
      %vm583 = vcmp.ge.f32.partialorder %v575, 0.0
      %v584 = vmul.f32 %v568, 0.2
      %v585 = vmul.f32 %v569, 0.2
      %v586 = vmul.f32 %v570, 0.2
      %v587 = vmul.f32 %v571, 0.2
      %v588 = vmul.f32 %v572, 0.2
      %v589 = vmul.f32 %v573, 0.2
      %v590 = vmul.f32 %v574, 0.2
      %v591 = vmul.f32 %v575, 0.2
      %v592 = vsel %vm576, %v568, %v584
      %v593 = vsel %vm577, %v569, %v585
      %v594 = vsel %vm578, %v570, %v586
      %v595 = vsel %vm579, %v571, %v587
      %v596 = vsel %vm580, %v572, %v588
      %v597 = vsel %vm581, %v573, %v589
      %v598 = vsel %vm582, %v574, %v590
      %v599 = vsel %vm583, %v575, %v591
      %v608 = vrot.slane %v592, 1
      %v609 = vrot.slane %v593, 1
      %v610 = vrot.slane %v594, 1
      %v611 = vrot.slane %v595, 1
      %v612 = vrot.slane %v596, 1
      %v613 = vrot.slane %v597, 1
      %v614 = vrot.slane %v598, 1
      %v615 = vrot.slane %v599, 1
      %v624 = vsel %vm257, %v608, 0.0
      %v625 = vsel %vm257, %v609, 0.0
      %v626 = vsel %vm257, %v610, 0.0
      %v627 = vsel %vm257, %v611, 0.0
      %v628 = vsel %vm257, %v612, 0.0
      %v629 = vsel %vm257, %v613, 0.0
      %v630 = vsel %vm257, %v614, 0.0
      %v631 = vsel %vm257, %v615, 0.0
      %v632 = vrot.slane %v592, 7
      %v633 = vrot.slane %v593, 7
      %v634 = vrot.slane %v594, 7
      %v635 = vrot.slane %v595, 7
      %v636 = vrot.slane %v596, 7
      %v637 = vrot.slane %v597, 7
      %v638 = vrot.slane %v598, 7
      %v639 = vrot.slane %v599, 7
      %640 = vrot.lane.b32.xlu0 %v632, 96
      %v641 = vpop.permute.xlu0 %640
      %642 = vrot.lane.b32.xlu0 %v633, 96
      %v643 = vpop.permute.xlu0 %642
      %644 = vrot.lane.b32.xlu0 %v634, 96
      %v645 = vpop.permute.xlu0 %644
      %646 = vrot.lane.b32.xlu0 %v635, 96
      %v647 = vpop.permute.xlu0 %646
      %648 = vrot.lane.b32.xlu0 %v636, 96
      %v649 = vpop.permute.xlu0 %648
      %650 = vrot.lane.b32.xlu0 %v637, 96
      %v651 = vpop.permute.xlu0 %650
      %652 = vrot.lane.b32.xlu0 %v638, 96
      %v653 = vpop.permute.xlu0 %652
      %654 = vrot.lane.b32.xlu0 %v639, 96
      %v655 = vpop.permute.xlu0 %654
      %vm664 = vcmask 1040384
      %v665 = vsel %vm664, 0.0, %v641
      %v666 = vsel %vm664, 0.0, %v643
      %v667 = vsel %vm664, 0.0, %v645
      %v668 = vsel %vm664, 0.0, %v647
      %v669 = vsel %vm664, 0.0, %v649
      %v670 = vsel %vm664, 0.0, %v651
      %v671 = vsel %vm664, 0.0, %v653
      %v672 = vsel %vm664, 0.0, %v655
      %v673 = vrot.slane 0.0, 7
      %674 = vrot.lane.b32.xlu0 %v673, 96
      %v675 = vpop.permute.xlu0 %674
      %v677 = vsel %vm664, 0.0, %v675
      %678 = vrot.lane.b32.xlu0 %v592, 64
      %v679 = vpop.permute.xlu0 %678
      %680 = vrot.lane.b32.xlu0 %v593, 64
      %v681 = vpop.permute.xlu0 %680
      %682 = vrot.lane.b32.xlu0 %v594, 64
      %v683 = vpop.permute.xlu0 %682
      %684 = vrot.lane.b32.xlu0 %v595, 64
      %v685 = vpop.permute.xlu0 %684
      %686 = vrot.lane.b32.xlu0 %v596, 64
      %v687 = vpop.permute.xlu0 %686
      %688 = vrot.lane.b32.xlu0 %v597, 64
      %v689 = vpop.permute.xlu0 %688
      %690 = vrot.lane.b32.xlu0 %v598, 64
      %v691 = vpop.permute.xlu0 %690
      %v699 = vrot.slane %v679, 1
      %v700 = vrot.slane %v681, 1
      %v701 = vrot.slane %v683, 1
      %v702 = vrot.slane %v685, 1
      %v703 = vrot.slane %v687, 1
      %v704 = vrot.slane %v689, 1
      %v705 = vrot.slane %v691, 1
      %v713 = vsel %vm257, %v699, 0.0
      %v714 = vsel %vm257, %v700, 0.0
      %v715 = vsel %vm257, %v701, 0.0
      %v716 = vsel %vm257, %v702, 0.0
      %v717 = vsel %vm257, %v703, 0.0
      %v718 = vsel %vm257, %v704, 0.0
      %v719 = vsel %vm257, %v705, 0.0
      %720 = vrot.lane.b32.xlu0 %v592, 32
      %v721 = vpop.permute.xlu0 %720
      %722 = vrot.lane.b32.xlu0 %v593, 32
      %v723 = vpop.permute.xlu0 %722
      %724 = vrot.lane.b32.xlu0 %v594, 32
      %v725 = vpop.permute.xlu0 %724
      %726 = vrot.lane.b32.xlu0 %v595, 32
      %v727 = vpop.permute.xlu0 %726
      %728 = vrot.lane.b32.xlu0 %v596, 32
      %v729 = vpop.permute.xlu0 %728
      %730 = vrot.lane.b32.xlu0 %v597, 32
      %v731 = vpop.permute.xlu0 %730
      %732 = vrot.lane.b32.xlu0 %v598, 32
      %v733 = vpop.permute.xlu0 %732
      %v734 = vrot.slane %v721, 7
      %v735 = vrot.slane %v723, 7
      %v736 = vrot.slane %v725, 7
      %v737 = vrot.slane %v727, 7
      %v738 = vrot.slane %v729, 7
      %v739 = vrot.slane %v731, 7
      %v740 = vrot.slane %v733, 7
      %v749 = vsel %vm664, 0.0, %v673
      %v750 = vsel %vm664, 0.0, %v734
      %v751 = vsel %vm664, 0.0, %v735
      %v752 = vsel %vm664, 0.0, %v736
      %v753 = vsel %vm664, 0.0, %v737
      %v754 = vsel %vm664, 0.0, %v738
      %v755 = vsel %vm664, 0.0, %v739
      %v756 = vsel %vm664, 0.0, %v740
      %757 = vrot.lane.b32.xlu0 %v632, 32
      %v758 = vpop.permute.xlu0 %757
      %759 = vrot.lane.b32.xlu0 %v633, 32
      %v760 = vpop.permute.xlu0 %759
      %761 = vrot.lane.b32.xlu0 %v634, 32
      %v762 = vpop.permute.xlu0 %761
      %763 = vrot.lane.b32.xlu0 %v635, 32
      %v764 = vpop.permute.xlu0 %763
      %765 = vrot.lane.b32.xlu0 %v636, 32
      %v766 = vpop.permute.xlu0 %765
      %767 = vrot.lane.b32.xlu0 %v637, 32
      %v768 = vpop.permute.xlu0 %767
      %769 = vrot.lane.b32.xlu0 %v638, 32
      %v770 = vpop.permute.xlu0 %769
      %771 = vrot.lane.b32.xlu0 %v639, 32
      %v772 = vpop.permute.xlu0 %771
      %v781 = vsel %vm664, 0.0, %v758
      %v782 = vsel %vm664, 0.0, %v760
      %v783 = vsel %vm664, 0.0, %v762
      %v784 = vsel %vm664, 0.0, %v764
      %v785 = vsel %vm664, 0.0, %v766
      %v786 = vsel %vm664, 0.0, %v768
      %v787 = vsel %vm664, 0.0, %v770
      %v788 = vsel %vm664, 0.0, %v772
      %797 = vrot.lane.b32.xlu0 %v624, 32
      %v798 = vpop.permute.xlu0 %797
      %799 = vrot.lane.b32.xlu0 %v625, 32
      %v800 = vpop.permute.xlu0 %799
      %801 = vrot.lane.b32.xlu0 %v626, 32
      %v802 = vpop.permute.xlu0 %801
      %803 = vrot.lane.b32.xlu0 %v627, 32
      %v804 = vpop.permute.xlu0 %803
      %805 = vrot.lane.b32.xlu0 %v628, 32
      %v806 = vpop.permute.xlu0 %805
      %807 = vrot.lane.b32.xlu0 %v629, 32
      %v808 = vpop.permute.xlu0 %807
      %809 = vrot.lane.b32.xlu0 %v630, 32
      %v810 = vpop.permute.xlu0 %809
      %811 = vrot.lane.b32.xlu0 %v631, 32
      %v812 = vpop.permute.xlu0 %811
      %829 = vrot.lane.b32.xlu0 %v665, 64
      %v830 = vpop.permute.xlu0 %829
      %831 = vrot.lane.b32.xlu0 %v666, 64
      %v832 = vpop.permute.xlu0 %831
      %833 = vrot.lane.b32.xlu0 %v667, 64
      %v834 = vpop.permute.xlu0 %833
      %835 = vrot.lane.b32.xlu0 %v668, 64
      %v836 = vpop.permute.xlu0 %835
      %837 = vrot.lane.b32.xlu0 %v669, 64
      %v838 = vpop.permute.xlu0 %837
      %839 = vrot.lane.b32.xlu0 %v670, 64
      %v840 = vpop.permute.xlu0 %839
      %841 = vrot.lane.b32.xlu0 %v671, 64
      %v842 = vpop.permute.xlu0 %841
      %843 = vrot.lane.b32.xlu0 %v672, 64
      %v844 = vpop.permute.xlu0 %843
      %853 = vrot.lane.b32.xlu0 %v599, 64
      %v854 = vpop.permute.xlu0 %853
      %856 = vrot.lane.b32.xlu0 %v269, 32
      %v857 = vpop.permute.xlu0 %856
      %860 = vrot.lane.b32.xlu0 %v677, 64
      %v861 = vpop.permute.xlu0 %860
      %863 = vrot.lane.b32.xlu0 0.0, 64
      %v864 = vpop.permute.xlu0 %863
      %873 = vrot.lane.b32.xlu0 %v713, 32
      %v874 = vpop.permute.xlu0 %873
      %875 = vrot.lane.b32.xlu0 %v714, 32
      %v876 = vpop.permute.xlu0 %875
      %877 = vrot.lane.b32.xlu0 %v715, 32
      %v878 = vpop.permute.xlu0 %877
      %879 = vrot.lane.b32.xlu0 %v716, 32
      %v880 = vpop.permute.xlu0 %879
      %881 = vrot.lane.b32.xlu0 %v717, 32
      %v882 = vpop.permute.xlu0 %881
      %883 = vrot.lane.b32.xlu0 %v718, 32
      %v884 = vpop.permute.xlu0 %883
      %885 = vrot.lane.b32.xlu0 %v719, 32
      %v886 = vpop.permute.xlu0 %885
      %902 = vrot.lane.b32.xlu0 %v749, 64
      %v903 = vpop.permute.xlu0 %902
      %904 = vrot.lane.b32.xlu0 %v750, 64
      %v905 = vpop.permute.xlu0 %904
      %906 = vrot.lane.b32.xlu0 %v751, 64
      %v907 = vpop.permute.xlu0 %906
      %908 = vrot.lane.b32.xlu0 %v752, 64
      %v909 = vpop.permute.xlu0 %908
      %910 = vrot.lane.b32.xlu0 %v753, 64
      %v911 = vpop.permute.xlu0 %910
      %912 = vrot.lane.b32.xlu0 %v754, 64
      %v913 = vpop.permute.xlu0 %912
      %914 = vrot.lane.b32.xlu0 %v755, 64
      %v915 = vpop.permute.xlu0 %914
      %916 = vrot.lane.b32.xlu0 %v756, 64
      %v917 = vpop.permute.xlu0 %916
      %926 = vrot.lane.b32.xlu0 0.0, 96
      %v927 = vpop.permute.xlu0 %926
      %928 = vrot.lane.b32.xlu0 %v721, 96
      %v929 = vpop.permute.xlu0 %928
      %930 = vrot.lane.b32.xlu0 %v723, 96
      %v931 = vpop.permute.xlu0 %930
      %932 = vrot.lane.b32.xlu0 %v725, 96
      %v933 = vpop.permute.xlu0 %932
      %934 = vrot.lane.b32.xlu0 %v727, 96
      %v935 = vpop.permute.xlu0 %934
      %936 = vrot.lane.b32.xlu0 %v729, 96
      %v937 = vpop.permute.xlu0 %936
      %938 = vrot.lane.b32.xlu0 %v731, 96
      %v939 = vpop.permute.xlu0 %938
      %940 = vrot.lane.b32.xlu0 %v733, 96
      %v941 = vpop.permute.xlu0 %940
      %950 = vrot.lane.b32.xlu0 %v624, 96
      %v951 = vpop.permute.xlu0 %950
      %952 = vrot.lane.b32.xlu0 %v625, 96
      %v953 = vpop.permute.xlu0 %952
      %954 = vrot.lane.b32.xlu0 %v626, 96
      %v955 = vpop.permute.xlu0 %954
      %956 = vrot.lane.b32.xlu0 %v627, 96
      %v957 = vpop.permute.xlu0 %956
      %958 = vrot.lane.b32.xlu0 %v628, 96
      %v959 = vpop.permute.xlu0 %958
      %960 = vrot.lane.b32.xlu0 %v629, 96
      %v961 = vpop.permute.xlu0 %960
      %962 = vrot.lane.b32.xlu0 %v630, 96
      %v963 = vpop.permute.xlu0 %962
      %964 = vrot.lane.b32.xlu0 %v631, 96
      %v965 = vpop.permute.xlu0 %964
      %982 = vrot.lane.b32.xlu0 %v781, 64
      %v983 = vpop.permute.xlu0 %982
      %984 = vrot.lane.b32.xlu0 %v782, 64
      %v985 = vpop.permute.xlu0 %984
      %986 = vrot.lane.b32.xlu0 %v783, 64
      %v987 = vpop.permute.xlu0 %986
      %988 = vrot.lane.b32.xlu0 %v784, 64
      %v989 = vpop.permute.xlu0 %988
      %990 = vrot.lane.b32.xlu0 %v785, 64
      %v991 = vpop.permute.xlu0 %990
      %992 = vrot.lane.b32.xlu0 %v786, 64
      %v993 = vpop.permute.xlu0 %992
      %994 = vrot.lane.b32.xlu0 %v787, 64
      %v995 = vpop.permute.xlu0 %994
      %996 = vrot.lane.b32.xlu0 %v788, 64
      %v997 = vpop.permute.xlu0 %996
      %v1006 = vsel %vm497, %v592, %v798
      %v1007 = vsel %vm497, %v593, %v800
      %v1008 = vsel %vm497, %v594, %v802
      %v1009 = vsel %vm497, %v595, %v804
      %v1010 = vsel %vm497, %v596, %v806
      %v1011 = vsel %vm497, %v597, %v808
      %v1012 = vsel %vm497, %v598, %v810
      %v1013 = vsel %vm497, %v599, %v812
      %v1014 = vsel %vm306, %v1006, %v830
      %v1015 = vsel %vm306, %v1007, %v832
      %v1016 = vsel %vm306, %v1008, %v834
      %v1017 = vsel %vm306, %v1009, %v836
      %v1018 = vsel %vm306, %v1010, %v838
      %v1019 = vsel %vm306, %v1011, %v840
      %v1020 = vsel %vm306, %v1012, %v842
      %v1021 = vsel %vm306, %v1013, %v844
      %v1022 = vsel %vm500, %v1014, %v679
      %v1023 = vsel %vm500, %v1015, %v681
      %v1024 = vsel %vm500, %v1016, %v683
      %v1025 = vsel %vm500, %v1017, %v685
      %v1026 = vsel %vm500, %v1018, %v687
      %v1027 = vsel %vm500, %v1019, %v689
      %v1028 = vsel %vm500, %v1020, %v691
      %v1029 = vsel %vm500, %v1021, %v854
      %v1030 = vsel %vm497, 0.0, %v857
      %v1031 = vsel %vm306, %v1030, %v861
      %v1032 = vsel %vm500, %v1031, %v864
      %v1033 = vsel %vm497, %v679, %v874
      %v1034 = vsel %vm497, %v681, %v876
      %v1035 = vsel %vm497, %v683, %v878
      %v1036 = vsel %vm497, %v685, %v880
      %v1037 = vsel %vm497, %v687, %v882
      %v1038 = vsel %vm497, %v689, %v884
      %v1039 = vsel %vm497, %v691, %v886
      %v1040 = vsel %vm306, %v1030, %v903
      %v1041 = vsel %vm306, %v1033, %v905
      %v1042 = vsel %vm306, %v1034, %v907
      %v1043 = vsel %vm306, %v1035, %v909
      %v1044 = vsel %vm306, %v1036, %v911
      %v1045 = vsel %vm306, %v1037, %v913
      %v1046 = vsel %vm306, %v1038, %v915
      %v1047 = vsel %vm306, %v1039, %v917
      %v1048 = vsel %vm500, %v1040, %v927
      %v1049 = vsel %vm500, %v1041, %v929
      %v1050 = vsel %vm500, %v1042, %v931
      %v1051 = vsel %vm500, %v1043, %v933
      %v1052 = vsel %vm500, %v1044, %v935
      %v1053 = vsel %vm500, %v1045, %v937
      %v1054 = vsel %vm500, %v1046, %v939
      %v1055 = vsel %vm500, %v1047, %v941
      %v1056 = vsel %vm497, %v679, %v951
      %v1057 = vsel %vm497, %v681, %v953
      %v1058 = vsel %vm497, %v683, %v955
      %v1059 = vsel %vm497, %v685, %v957
      %v1060 = vsel %vm497, %v687, %v959
      %v1061 = vsel %vm497, %v689, %v961
      %v1062 = vsel %vm497, %v691, %v963
      %v1063 = vsel %vm497, %v854, %v965
      %v1064 = vsel %vm306, %v1056, %v983
      %v1065 = vsel %vm306, %v1057, %v985
      %v1066 = vsel %vm306, %v1058, %v987
      %v1067 = vsel %vm306, %v1059, %v989
      %v1068 = vsel %vm306, %v1060, %v991
      %v1069 = vsel %vm306, %v1061, %v993
      %v1070 = vsel %vm306, %v1062, %v995
      %v1071 = vsel %vm306, %v1063, %v997
      %v1072 = vsel %vm500, %v1064, %v592
      %v1073 = vsel %vm500, %v1065, %v593
      %v1074 = vsel %vm500, %v1066, %v594
      %v1075 = vsel %vm500, %v1067, %v595
      %v1076 = vsel %vm500, %v1068, %v596
      %v1077 = vsel %vm500, %v1069, %v597
      %v1078 = vsel %vm500, %v1070, %v598
      %v1079 = vsel %vm500, %v1071, %v599
      %v1080 = vld [vmem:[%s3] sm:$0xff]
      %v1081 = vld [vmem:[%s3 + $0x8] sm:$0xff]
      %v1082 = vld [vmem:[%s3 + $0x10] sm:$0xff]
      %v1083 = vld [vmem:[%s3 + $0x18] sm:$0xff]
      %v1084 = vld [vmem:[%s3 + $0x20] sm:$0xff]
      %v1085 = vld [vmem:[%s3 + $0x28] sm:$0xff]
      %v1086 = vld [vmem:[%s3 + $0x30] sm:$0xff]
      %v1087 = vld [vmem:[%s3 + $0x38] sm:$0xff]
      %v1088 = vld [vmem:[%s3 + $0x40] sm:$0xff]
      %v1089 = vld [vmem:[%s3 + $0x48] sm:$0xff]
      %v1090 = vld [vmem:[%s3 + $0x50] sm:$0xff]
      %v1091 = vld [vmem:[%s3 + $0x58] sm:$0xff]
      %v1092 = vld [vmem:[%s3 + $0x60] sm:$0xff]
      %v1093 = vld [vmem:[%s3 + $0x68] sm:$0xff]
      %v1094 = vld [vmem:[%s3 + $0x70] sm:$0xff]
      %v1095 = vld [vmem:[%s3 + $0x78] sm:$0xff]
      %v1096 = vld [vmem:[%s3 + $0x80] sm:$0xff]
      %v1097 = vld [vmem:[%s3 + $0x88] sm:$0xff]
      %v1098 = vld [vmem:[%s3 + $0x90] sm:$0xff]
      %v1099 = vld [vmem:[%s3 + $0x98] sm:$0xff]
      %v1100 = vld [vmem:[%s3 + $0xa0] sm:$0xff]
      %v1101 = vld [vmem:[%s3 + $0xa8] sm:$0xff]
      %v1102 = vld [vmem:[%s3 + $0xb0] sm:$0xff]
      %v1103 = vld [vmem:[%s3 + $0xb8] sm:$0xff]
      %v1104 = vld [vmem:[%s3 + $0xc0] sm:$0xff]
      %v1105 = vld [vmem:[%s3 + $0xc8] sm:$0xff]
      %v1106 = vld [vmem:[%s3 + $0xd0] sm:$0xff]
      %v1107 = vld [vmem:[%s3 + $0xd8] sm:$0xff]
      %v1108 = vld [vmem:[%s3 + $0xe0] sm:$0xff]
      %v1109 = vld [vmem:[%s3 + $0xe8] sm:$0xff]
      %v1110 = vld [vmem:[%s3 + $0xf0] sm:$0xff]
      %v1111 = vld [vmem:[%s3 + $0xf8] sm:$0xff]
      %v1112 = vld [vmem:[%s3 + $0x100] sm:$0xff]
      %v1113 = vld [vmem:[%s3 + $0x108] sm:$0xff]
      %v1114 = vld [vmem:[%s3 + $0x110] sm:$0xff]
      %v1115 = vld [vmem:[%s3 + $0x118] sm:$0xff]
      %v1116 = vld [vmem:[%s3 + $0x120] sm:$0xff]
      %v1117 = vld [vmem:[%s3 + $0x128] sm:$0xff]
      %v1118 = vld [vmem:[%s3 + $0x130] sm:$0xff]
      %v1119 = vld [vmem:[%s3 + $0x138] sm:$0xff]
      %v1120 = vld [vmem:[%s3 + $0x140] sm:$0xff]
      %v1121 = vld [vmem:[%s3 + $0x148] sm:$0xff]
      %v1122 = vld [vmem:[%s3 + $0x150] sm:$0xff]
      %v1123 = vld [vmem:[%s3 + $0x158] sm:$0xff]
      %v1124 = vld [vmem:[%s3 + $0x160] sm:$0xff]
      %v1125 = vld [vmem:[%s3 + $0x168] sm:$0xff]
      %v1126 = vld [vmem:[%s3 + $0x170] sm:$0xff]
      %v1127 = vld [vmem:[%s3 + $0x178] sm:$0xff]
      %v1128 = vld [vmem:[%s3 + $0x180] sm:$0xff]
      %v1129 = vld [vmem:[%s3 + $0x188] sm:$0xff]
      %v1130 = vld [vmem:[%s3 + $0x190] sm:$0xff]
      %v1131 = vld [vmem:[%s3 + $0x198] sm:$0xff]
      %v1132 = vld [vmem:[%s3 + $0x1a0] sm:$0xff]
      %v1133 = vld [vmem:[%s3 + $0x1a8] sm:$0xff]
      %v1134 = vld [vmem:[%s3 + $0x1b0] sm:$0xff]
      %v1135 = vld [vmem:[%s3 + $0x1b8] sm:$0xff]
      %v1136 = vld [vmem:[%s3 + $0x1c0] sm:$0xff]
      %v1137 = vld [vmem:[%s3 + $0x1c8] sm:$0xff]
      %v1138 = vld [vmem:[%s3 + $0x1d0] sm:$0xff]
      %v1139 = vld [vmem:[%s3 + $0x1d8] sm:$0xff]
      %v1140 = vld [vmem:[%s3 + $0x1e0] sm:$0xff]
      %v1141 = vld [vmem:[%s3 + $0x1e8] sm:$0xff]
      %v1142 = vld [vmem:[%s3 + $0x1f0] sm:$0xff]
      %v1143 = vld [vmem:[%s3 + $0x1f8] sm:$0xff]
      %v1144 = vld [vmem:[%s4] sm:$0x1]
      %v1146 = vlaneseq
      %v1147 = vshrl.u32 %v1146, 7
      %v1148 = vsub.s32 0, %v1147
      %v1149 = vrot.slane %v1144, %v1148
      %1151 = vmatprep.subr.mxu0 0.0
      %1152 = vmatpush1.msra.mxu0 %v1095
      %1153 = vmatprep.subr.mxu0 0.0
      %1154 = vmatpush1.msra.mxu0 %v1094
      %1155 = vmatprep.subr.mxu0 0.0
      %1156 = vmatpush1.msra.mxu0 %v1093
      %1157 = vmatprep.subr.mxu0 0.0
      %1158 = vmatpush1.msra.mxu0 %v1092
      %1159 = vmatprep.subr.mxu0 0.0
      %1160 = vmatpush1.msra.mxu0 %v1091
      %1161 = vmatprep.subr.mxu0 0.0
      %1162 = vmatpush1.msra.mxu0 %v1090
      %1163 = vmatprep.subr.mxu0 0.0
      %1164 = vmatpush1.msra.mxu0 %v1089
      %1165 = vmatprep.subr.mxu0 0.0
      %1166 = vmatpush1.msra.mxu0 %v1088
      %1167 = vmatprep.subr.mxu0 0.0
      %1168 = vmatpush1.msra.mxu0 %v1087
      %1169 = vmatprep.subr.mxu0 0.0
      %1170 = vmatpush1.msra.mxu0 %v1086
      %1171 = vmatprep.subr.mxu0 0.0
      %1172 = vmatpush1.msra.mxu0 %v1085
      %1173 = vmatprep.subr.mxu0 0.0
      %1174 = vmatpush1.msra.mxu0 %v1084
      %1175 = vmatprep.subr.mxu0 0.0
      %1176 = vmatpush1.msra.mxu0 %v1083
      %1177 = vmatprep.subr.mxu0 0.0
      %1178 = vmatpush1.msra.mxu0 %v1082
      %1179 = vmatprep.subr.mxu0 0.0
      %1180 = vmatpush1.msra.mxu0 %v1081
      %1181 = vmatprep.subr.mxu0 0.0
      %1182 = vmatpush1.msra.mxu0 %v1080
      %1183 = vmatprep.subr.mxu0 0.0
      %1184 = vmatpush2.msra.mxu0 %v1111
      %1185 = vmatprep.subr.mxu0 0.0
      %1186 = vmatpush2.msra.mxu0 %v1110
      %1187 = vmatprep.subr.mxu0 0.0
      %1188 = vmatpush2.msra.mxu0 %v1109
      %1189 = vmatprep.subr.mxu0 0.0
      %1190 = vmatpush2.msra.mxu0 %v1108
      %1191 = vmatprep.subr.mxu0 0.0
      %1192 = vmatpush2.msra.mxu0 %v1107
      %1193 = vmatprep.subr.mxu0 0.0
      %1194 = vmatpush2.msra.mxu0 %v1106
      %1195 = vmatprep.subr.mxu0 0.0
      %1196 = vmatpush2.msra.mxu0 %v1105
      %1197 = vmatprep.subr.mxu0 0.0
      %1198 = vmatpush2.msra.mxu0 %v1104
      %1199 = vmatprep.subr.mxu0 0.0
      %1200 = vmatpush2.msra.mxu0 %v1103
      %1201 = vmatprep.subr.mxu0 0.0
      %1202 = vmatpush2.msra.mxu0 %v1102
      %1203 = vmatprep.subr.mxu0 0.0
      %1204 = vmatpush2.msra.mxu0 %v1101
      %1205 = vmatprep.subr.mxu0 0.0
      %1206 = vmatpush2.msra.mxu0 %v1100
      %1207 = vmatprep.subr.mxu0 0.0
      %1208 = vmatpush2.msra.mxu0 %v1099
      %1209 = vmatprep.subr.mxu0 0.0
      %1210 = vmatpush2.msra.mxu0 %v1098
      %1211 = vmatprep.subr.mxu0 0.0
      %1212 = vmatpush2.msra.mxu0 %v1097
      %1213 = vmatprep.subr.mxu0 0.0
      %1214 = vmatpush2.msra.mxu0 %v1096
      %1215 = vmatprep.mubr.f32.mxu0 %v1023
      %1216 = vmatmul.mubr.f32.gmra.mxu0 %v1022
      %v1217 = vpop.f32.mrf.mxu0
      %v1218 = vadd.f32 %v1149, %v1217
      %v1219 = vpop.f32.mrf.mxu0
      %1220 = vmatprep.mubr.f32.mxu0 %v1024
      %1221 = vmatmul.mubr.f32.gmra.mxu0 %v1023
      %v1222 = vpop.f32.mrf.mxu0
      %v1223 = vadd.f32 %v1149, %v1222
      %v1224 = vpop.f32.mrf.mxu0
      %1225 = vmatprep.mubr.f32.mxu0 %v1025
      %1226 = vmatmul.mubr.f32.gmra.mxu0 %v1024
      %v1227 = vpop.f32.mrf.mxu0
      %v1228 = vadd.f32 %v1149, %v1227
      %v1229 = vpop.f32.mrf.mxu0
      %1230 = vmatprep.mubr.f32.mxu0 %v1026
      %1231 = vmatmul.mubr.f32.gmra.mxu0 %v1025
      %v1232 = vpop.f32.mrf.mxu0
      %v1233 = vadd.f32 %v1149, %v1232
      %v1234 = vpop.f32.mrf.mxu0
      %1235 = vmatprep.mubr.f32.mxu0 %v1027
      %1236 = vmatmul.mubr.f32.gmra.mxu0 %v1026
      %v1237 = vpop.f32.mrf.mxu0
      %v1238 = vadd.f32 %v1149, %v1237
      %v1239 = vpop.f32.mrf.mxu0
      %1240 = vmatprep.mubr.f32.mxu0 %v1028
      %1241 = vmatmul.mubr.f32.gmra.mxu0 %v1027
      %v1242 = vpop.f32.mrf.mxu0
      %v1243 = vadd.f32 %v1149, %v1242
      %v1244 = vpop.f32.mrf.mxu0
      %1245 = vmatprep.mubr.f32.mxu0 %v1029
      %1246 = vmatmul.mubr.f32.gmra.mxu0 %v1028
      %v1247 = vpop.f32.mrf.mxu0
      %v1248 = vadd.f32 %v1149, %v1247
      %v1249 = vpop.f32.mrf.mxu0
      %1250 = vmatprep.mubr.f32.mxu0 %v1032
      %1251 = vmatmul.mubr.f32.gmra.mxu0 %v1029
      %v1252 = vpop.f32.mrf.mxu0
      %v1253 = vadd.f32 %v1149, %v1252
      %v1254 = vpop.f32.mrf.mxu0
      %1255 = vdwg.mxu0
      %1256 = vmatprep.subr.mxu0 0.0
      %1257 = vmatpush1.msra.mxu0 %v1127
      %1258 = vmatprep.subr.mxu0 0.0
      %1259 = vmatpush1.msra.mxu0 %v1126
      %1260 = vmatprep.subr.mxu0 0.0
      %1261 = vmatpush1.msra.mxu0 %v1125
      %1262 = vmatprep.subr.mxu0 0.0
      %1263 = vmatpush1.msra.mxu0 %v1124
      %1264 = vmatprep.subr.mxu0 0.0
      %1265 = vmatpush1.msra.mxu0 %v1123
      %1266 = vmatprep.subr.mxu0 0.0
      %1267 = vmatpush1.msra.mxu0 %v1122
      %1268 = vmatprep.subr.mxu0 0.0
      %1269 = vmatpush1.msra.mxu0 %v1121
      %1270 = vmatprep.subr.mxu0 0.0
      %1271 = vmatpush1.msra.mxu0 %v1120
      %1272 = vmatprep.subr.mxu0 0.0
      %1273 = vmatpush1.msra.mxu0 %v1119
      %1274 = vmatprep.subr.mxu0 0.0
      %1275 = vmatpush1.msra.mxu0 %v1118
      %1276 = vmatprep.subr.mxu0 0.0
      %1277 = vmatpush1.msra.mxu0 %v1117
      %1278 = vmatprep.subr.mxu0 0.0
      %1279 = vmatpush1.msra.mxu0 %v1116
      %1280 = vmatprep.subr.mxu0 0.0
      %1281 = vmatpush1.msra.mxu0 %v1115
      %1282 = vmatprep.subr.mxu0 0.0
      %1283 = vmatpush1.msra.mxu0 %v1114
      %1284 = vmatprep.subr.mxu0 0.0
      %1285 = vmatpush1.msra.mxu0 %v1113
      %1286 = vmatprep.subr.mxu0 0.0
      %1287 = vmatpush1.msra.mxu0 %v1112
      %1288 = vmatprep.subr.mxu0 0.0
      %1289 = vmatpush2.msra.mxu0 %v1143
      %1290 = vmatprep.subr.mxu0 0.0
      %1291 = vmatpush2.msra.mxu0 %v1142
      %1292 = vmatprep.subr.mxu0 0.0
      %1293 = vmatpush2.msra.mxu0 %v1141
      %1294 = vmatprep.subr.mxu0 0.0
      %1295 = vmatpush2.msra.mxu0 %v1140
      %1296 = vmatprep.subr.mxu0 0.0
      %1297 = vmatpush2.msra.mxu0 %v1139
      %1298 = vmatprep.subr.mxu0 0.0
      %1299 = vmatpush2.msra.mxu0 %v1138
      %1300 = vmatprep.subr.mxu0 0.0
      %1301 = vmatpush2.msra.mxu0 %v1137
      %1302 = vmatprep.subr.mxu0 0.0
      %1303 = vmatpush2.msra.mxu0 %v1136
      %1304 = vmatprep.subr.mxu0 0.0
      %1305 = vmatpush2.msra.mxu0 %v1135
      %1306 = vmatprep.subr.mxu0 0.0
      %1307 = vmatpush2.msra.mxu0 %v1134
      %1308 = vmatprep.subr.mxu0 0.0
      %1309 = vmatpush2.msra.mxu0 %v1133
      %1310 = vmatprep.subr.mxu0 0.0
      %1311 = vmatpush2.msra.mxu0 %v1132
      %1312 = vmatprep.subr.mxu0 0.0
      %1313 = vmatpush2.msra.mxu0 %v1131
      %1314 = vmatprep.subr.mxu0 0.0
      %1315 = vmatpush2.msra.mxu0 %v1130
      %1316 = vmatprep.subr.mxu0 0.0
      %1317 = vmatpush2.msra.mxu0 %v1129
      %1318 = vmatprep.subr.mxu0 0.0
      %1319 = vmatpush2.msra.mxu0 %v1128
      %1320 = vmatprep.mubr.f32.mxu0 %v1072
      %1321 = vmatmul.mubr.f32.gmra.mxu0 %v1048
      %v1322 = vpop.f32.mrf.mxu0
      %v1323 = vadd.f32 %v1218, %v1322
      %v1324 = vpop.f32.mrf.mxu0
      %1325 = vmatprep.mubr.f32.mxu0 %v1073
      %1326 = vmatmul.mubr.f32.gmra.mxu0 %v1049
      %v1327 = vpop.f32.mrf.mxu0
      %v1328 = vadd.f32 %v1223, %v1327
      %v1329 = vpop.f32.mrf.mxu0
      %1330 = vmatprep.mubr.f32.mxu0 %v1074
      %1331 = vmatmul.mubr.f32.gmra.mxu0 %v1050
      %v1332 = vpop.f32.mrf.mxu0
      %v1333 = vadd.f32 %v1228, %v1332
      %v1334 = vpop.f32.mrf.mxu0
      %1335 = vmatprep.mubr.f32.mxu0 %v1075
      %1336 = vmatmul.mubr.f32.gmra.mxu0 %v1051
      %v1337 = vpop.f32.mrf.mxu0
      %v1338 = vadd.f32 %v1233, %v1337
      %v1339 = vpop.f32.mrf.mxu0
      %1340 = vmatprep.mubr.f32.mxu0 %v1076
      %1341 = vmatmul.mubr.f32.gmra.mxu0 %v1052
      %v1342 = vpop.f32.mrf.mxu0
      %v1343 = vadd.f32 %v1238, %v1342
      %v1344 = vpop.f32.mrf.mxu0
      %1345 = vmatprep.mubr.f32.mxu0 %v1077
      %1346 = vmatmul.mubr.f32.gmra.mxu0 %v1053
      %v1347 = vpop.f32.mrf.mxu0
      %v1348 = vadd.f32 %v1243, %v1347
      %v1349 = vpop.f32.mrf.mxu0
      %1350 = vmatprep.mubr.f32.mxu0 %v1078
      %1351 = vmatmul.mubr.f32.gmra.mxu0 %v1054
      %v1352 = vpop.f32.mrf.mxu0
      %v1353 = vadd.f32 %v1248, %v1352
      %v1354 = vpop.f32.mrf.mxu0
      %1355 = vmatprep.mubr.f32.mxu0 %v1079
      %1356 = vmatmul.mubr.f32.gmra.mxu0 %v1055
      %v1357 = vpop.f32.mrf.mxu0
      %v1358 = vadd.f32 %v1253, %v1357
      %v1359 = vpop.f32.mrf.mxu0
      %1360 = vdwg.mxu0
      %vm1361 = vcmask 97280
      %v1362 = vsel %vm1361, %v1323, 0.0
      %v1363 = vsel %vm1361, %v1328, 0.0
      %v1364 = vadd.f32 %v1362, %v1363
      %v1365 = vsel %vm1361, %v1333, 0.0
      %v1366 = vadd.f32 %v1364, %v1365
      %v1367 = vsel %vm1361, %v1338, 0.0
      %v1368 = vadd.f32 %v1366, %v1367
      %v1369 = vsel %vm1361, %v1343, 0.0
      %v1370 = vadd.f32 %v1368, %v1369
      %v1371 = vsel %vm1361, %v1348, 0.0
      %v1372 = vadd.f32 %v1370, %v1371
      %v1373 = vsel %vm1361, %v1353, 0.0
      %v1374 = vadd.f32 %v1372, %v1373
      %v1375 = vsel %vm1361, %v1358, 0.0
      %v1376 = vadd.f32 %v1374, %v1375
      %v1377 = vrot.slane %v1376, 4
      %v1378 = vadd.f32 %v1376, %v1377
      %v1379 = vrot.slane %v1378, 2
      %v1380 = vadd.f32 %v1378, %v1379
      %v1381 = vrot.slane %v1380, 1
      %v1382 = vadd.f32 %v1380, %v1381
      %1384 = vrot.lane.b32.xlu0 %v1382, 125
      %v1385 = vpop.permute.xlu0 %1384
      %v1387 = vadd.f32 %v1382, %v1385
      %1388 = vrot.lane.b32.xlu0 %v1382, 122
      %v1389 = vpop.permute.xlu0 %1388
      %v1391 = vadd.f32 %v1387, %v1389
      %1392 = vrot.lane.b32.xlu0 %v1382, 119
      %v1393 = vpop.permute.xlu0 %1392
      %v1395 = vadd.f32 %v1391, %v1393
      %v1396 = vmul.f32 %v1395, 0.00390625
      %1398 = vrot.lane.b32.xlu0 %v1396, 3
      %v1399 = vpop.permute.xlu0 %1398
      %1401 = vrot.lane.b32.xlu0 %v1396, 6
      %v1402 = vpop.permute.xlu0 %1401
      %1404 = vrot.lane.b32.xlu0 %v1396, 9
      %v1405 = vpop.permute.xlu0 %1404
      %vm1407 = vcmask 23552
      %v1408 = vsel %vm1407, %v1396, %v1399
      %vm1409 = vcmask 48128
      %v1410 = vsel %vm1409, %v1408, %v1402
      %vm1411 = vcmask 72704
      %v1412 = vsel %vm1411, %v1410, %v1405
      %v1413 = vlaneseq
      %v1414 = vshrl.u32 %v1413, 7
      %v1415 = vsub.s32 0, %v1414
      %v1416 = vrot.slane %v1412, %v1415
      %v1417 = vsub.f32 %v1323, %v1416
      %v1418 = vsub.f32 %v1328, %v1416
      %v1419 = vsub.f32 %v1333, %v1416
      %v1420 = vsub.f32 %v1338, %v1416
      %v1421 = vsub.f32 %v1343, %v1416
      %v1422 = vsub.f32 %v1348, %v1416
      %v1423 = vsub.f32 %v1353, %v1416
      %v1424 = vsub.f32 %v1358, %v1416
      %v1425 = vmul.f32 %v1417, %v1417
      %v1426 = vmul.f32 %v1418, %v1418
      %v1427 = vmul.f32 %v1419, %v1419
      %v1428 = vmul.f32 %v1420, %v1420
      %v1429 = vmul.f32 %v1421, %v1421
      %v1430 = vmul.f32 %v1422, %v1422
      %v1431 = vmul.f32 %v1423, %v1423
      %v1432 = vmul.f32 %v1424, %v1424
      %v1433 = vsel %vm1361, %v1425, 0.0
      %v1434 = vsel %vm1361, %v1426, 0.0
      %v1435 = vadd.f32 %v1433, %v1434
      %v1436 = vsel %vm1361, %v1427, 0.0
      %v1437 = vadd.f32 %v1435, %v1436
      %v1438 = vsel %vm1361, %v1428, 0.0
      %v1439 = vadd.f32 %v1437, %v1438
      %v1440 = vsel %vm1361, %v1429, 0.0
      %v1441 = vadd.f32 %v1439, %v1440
      %v1442 = vsel %vm1361, %v1430, 0.0
      %v1443 = vadd.f32 %v1441, %v1442
      %v1444 = vsel %vm1361, %v1431, 0.0
      %v1445 = vadd.f32 %v1443, %v1444
      %v1446 = vsel %vm1361, %v1432, 0.0
      %v1447 = vadd.f32 %v1445, %v1446
      %v1448 = vrot.slane %v1447, 4
      %v1449 = vadd.f32 %v1447, %v1448
      %v1450 = vrot.slane %v1449, 2
      %v1451 = vadd.f32 %v1449, %v1450
      %v1452 = vrot.slane %v1451, 1
      %v1453 = vadd.f32 %v1451, %v1452
      %1455 = vrot.lane.b32.xlu0 %v1453, 125
      %v1456 = vpop.permute.xlu0 %1455
      %v1458 = vadd.f32 %v1453, %v1456
      %1459 = vrot.lane.b32.xlu0 %v1453, 122
      %v1460 = vpop.permute.xlu0 %1459
      %v1462 = vadd.f32 %v1458, %v1460
      %1463 = vrot.lane.b32.xlu0 %v1453, 119
      %v1464 = vpop.permute.xlu0 %1463
      %v1466 = vadd.f32 %v1462, %v1464
      %v1467 = vmul.f32 %v1466, 0.00390625
      %1469 = vrot.lane.b32.xlu0 %v1467, 3
      %v1470 = vpop.permute.xlu0 %1469
      %1472 = vrot.lane.b32.xlu0 %v1467, 6
      %v1473 = vpop.permute.xlu0 %1472
      %1475 = vrot.lane.b32.xlu0 %v1467, 9
      %v1476 = vpop.permute.xlu0 %1475
      %v1478 = vsel %vm1407, %v1467, %v1470
      %v1479 = vsel %vm1409, %v1478, %v1473
      %v1480 = vsel %vm1411, %v1479, %v1476
      %v1481 = vadd.f32 %v1480, 1e-05
      %v1482 = vrsqrt.pop %v1481
      %v1483 = vlaneseq
      %v1484 = vshrl.u32 %v1483, 7
      %v1485 = vsub.s32 0, %v1484
      %v1486 = vrot.slane %v1482, %v1485
      %v1487 = vmul.f32 %v1417, %v1486
      %v1488 = vmul.f32 %v1418, %v1486
      %v1489 = vmul.f32 %v1419, %v1486
      %v1490 = vmul.f32 %v1420, %v1486
      %v1491 = vmul.f32 %v1421, %v1486
      %v1492 = vmul.f32 %v1422, %v1486
      %v1493 = vmul.f32 %v1423, %v1486
      %v1494 = vmul.f32 %v1424, %v1486
      %v1495 = vsub.f32 0.0, %v1487
      %v1496 = vsub.f32 0.0, %v1488
      %v1497 = vsub.f32 0.0, %v1489
      %v1498 = vsub.f32 0.0, %v1490
      %v1499 = vsub.f32 0.0, %v1491
      %v1500 = vsub.f32 0.0, %v1492
      %v1501 = vsub.f32 0.0, %v1493
      %v1502 = vsub.f32 0.0, %v1494
      %v1503 = vmul.f32 %v1495, 1.442695
      %v1504 = vpow.pop %v1503
      %v1505 = vmul.f32 %v1496, 1.442695
      %v1506 = vpow.pop %v1505
      %v1507 = vmul.f32 %v1497, 1.442695
      %v1508 = vpow.pop %v1507
      %v1509 = vmul.f32 %v1498, 1.442695
      %v1510 = vpow.pop %v1509
      %v1511 = vmul.f32 %v1499, 1.442695
      %v1512 = vpow.pop %v1511
      %v1513 = vmul.f32 %v1500, 1.442695
      %v1514 = vpow.pop %v1513
      %v1515 = vmul.f32 %v1501, 1.442695
      %v1516 = vpow.pop %v1515
      %v1517 = vmul.f32 %v1502, 1.442695
      %v1518 = vpow.pop %v1517
      %v1519 = vadd.f32 %v1504, 1.0
      %v1520 = vadd.f32 %v1506, 1.0
      %v1521 = vadd.f32 %v1508, 1.0
      %v1522 = vadd.f32 %v1510, 1.0
      %v1523 = vadd.f32 %v1512, 1.0
      %v1524 = vadd.f32 %v1514, 1.0
      %v1525 = vadd.f32 %v1516, 1.0
      %v1526 = vadd.f32 %v1518, 1.0
      %v1527 = vrcp.pop %v1519
      %v1528 = vmul.f32 1.0, %v1527
      %v1529 = vrcp.pop %v1520
      %v1530 = vmul.f32 1.0, %v1529
      %v1531 = vrcp.pop %v1521
      %v1532 = vmul.f32 1.0, %v1531
      %v1533 = vrcp.pop %v1522
      %v1534 = vmul.f32 1.0, %v1533
      %v1535 = vrcp.pop %v1523
      %v1536 = vmul.f32 1.0, %v1535
      %v1537 = vrcp.pop %v1524
      %v1538 = vmul.f32 1.0, %v1537
      %v1539 = vrcp.pop %v1525
      %v1540 = vmul.f32 1.0, %v1539
      %v1541 = vrcp.pop %v1526
      %v1542 = vmul.f32 1.0, %v1541
      %1543 = vst.msk [vmem:[%s224] sm:$0xff] %vm1361, %v1528
      %1544 = vst.msk [vmem:[%s224 + $0x8] sm:$0xff] %vm1361, %v1530
      %1545 = vst.msk [vmem:[%s224 + $0x10] sm:$0xff] %vm1361, %v1532
      %1546 = vst.msk [vmem:[%s224 + $0x18] sm:$0xff] %vm1361, %v1534
      %1547 = vst.msk [vmem:[%s224 + $0x20] sm:$0xff] %vm1361, %v1536
      %1548 = vst.msk [vmem:[%s224 + $0x28] sm:$0xff] %vm1361, %v1538
      %1549 = vst.msk [vmem:[%s224 + $0x30] sm:$0xff] %vm1361, %v1540
      %1550 = vst.msk [vmem:[%s224 + $0x38] sm:$0xff] %vm1361, %v1542
      %p1551 = scmp.lt.s32.totalorder %s16, 1
      %s1552 = scalar_select %p1551, %s16, 1
      %s1553 = smul.addr %s1552, 8
      %s1554 = smul.addr %s1553, 8
      %s1555 = scalar_lea.vmem %s5, %s1554
      // Predicated region
      $region41: #{decoder_forward.1} parent=39 // pred_check
        %p1556 = pneg %p144
      $region42: #{decoder_forward.1} parent=39 // pred_check_branch
        %1558 = sbr.rel (%p1556) target = $region44
      $region43: #{decoder_forward.1} parent=39 // pred_region
        _
      $region44: #{decoder_forward.1} parent=39 // pred_fallthru
        _
    $region40: #{decoder_forward.1} parent=5 // pred_fallthru
      _
    %p1559 = scmp.le.s32.totalorder 2, %s11
    // Predicated region
    $region45: #{decoder_forward.1} parent=5 // pred_check
      %p1560 = pneg %p1559
    $region46: #{decoder_forward.1} parent=5 // pred_check_branch
      %1562 = sbr.rel (%p1560) target = $region48
    $region47: #{decoder_forward.1} parent=5 // pred_region
      %s1563 = ssub.s32 %s11, 2
      // Predicated region
      $region49: #{decoder_forward.1} parent=47 // pred_check
        %p1564 = pneg %p150
      $region50: #{decoder_forward.1} parent=47 // pred_check_branch
        %1566 = sbr.rel (%p1564) target = $region52
      $region51: #{decoder_forward.1} parent=47 // pred_region
        %p1567 = scmp.lt.s32.totalorder %s17, 1
        %s1568 = scalar_select %p1567, %s17, 1
        %s1569 = smul.addr %s1568, 8
        %s1570 = smul.addr %s1569, 8
        %s1571 = scalar_lea.vmem %s5, %s1570
      $region52: #{decoder_forward.1} parent=47 // pred_fallthru
        _
    $region48: #{decoder_forward.1} parent=5 // pred_fallthru
      _
  $region6: #{decoder_forward.1} parent=0 // loop_footer
    %s15 = sadd.s32 1, %s11
  $region7: #{decoder_forward.1} parent=0 // loop_footer_branch
    %10 = sbr.rel target = $region3
  $region8: #{decoder_forward.1} parent=0 // loop_exit
    _

</llo_original>
